<compile_context>
chip_gen: v7x
topology: tpu7x:2x2x1
jax: 0.10.0
libtpu: 0.0.40
codegen_flags: <defaults>
</compile_context>

<pallas_src>
import functools

import numpy as np
import jax
import jax.numpy as jnp
from jax.experimental import pallas as pl
from jax.experimental.pallas import tpu as pltpu

INTER_DIM = 512
OUT_PAD = 128          # lane-dense padding of the 1-wide output head
BN_EPS = 0.8
LEAKY_SLOPE = 0.2


def _leaky_relu(x):
    return jnp.where(x >= 0, x, LEAKY_SLOPE * x)


def discriminator_kernel(has_hidden,
                         x_ref, emb_add_ref, w_in_ref, b_in_ref,
                         w_h_ref, b_h_ref, w_out_ref, b_out_ref,
                         out_ref, h_ref):
    """Grid axis = hidden block index. h_ref is a resident f32 activation scratch."""
    i = pl.program_id(0)
    last = pl.num_programs(0) - 1

    # ---- in_block: Linear(d_img -> 512) + label contribution + LeakyReLU ----
    @pl.when(i == 0)
    def _():
        h = jnp.dot(x_ref[...].astype(jnp.bfloat16), w_in_ref[...],
                    preferred_element_type=jnp.float32)
        h = h + emb_add_ref[...] + b_in_ref[...]
        h_ref[...] = _leaky_relu(h)

    # ---- inter_block i: Linear(512,512) with BN pre-folded + LeakyReLU ----
    if has_hidden:  # static Python flag (n_blocks > 0)
        z = jnp.dot(h_ref[...].astype(jnp.bfloat16), w_h_ref[0],
                    preferred_element_type=jnp.float32) + b_h_ref[0]
        h_ref[...] = _leaky_relu(z)
        # TODO(synk): nn.Dropout(p=0.5) is identity in eval mode; the torch
        # train-mode dropout RNG stream is not reproduced here.

    # ---- out_block: Linear(512 -> 1, padded to 128 lanes) + Sigmoid ----
    @pl.when(i == last)
    def _():
        logits = jnp.dot(h_ref[...].astype(jnp.bfloat16), w_out_ref[...],
                         preferred_element_type=jnp.float32) + b_out_ref[...]
        # sigmoid via EUP (exp + approx reciprocal) instead of VALU divide
        out_ref[...] = pl.reciprocal(1.0 + jnp.exp(-logits), approx=True)


def init_params(key, in_shape, n_blocks, num_classes):
    """Raw f32 params matching the module's _init_weights
    (xavier_normal_ for Linear/Embedding weights, zeros for biases).
    Weights are stored feature-last as (in, out)."""
    d_img = int(np.prod(in_shape))
    d_in = d_img + num_classes

    def xavier_normal(k, fan_in, fan_out, shape):
        std = float(np.sqrt(2.0 / (fan_in + fan_out)))
        return std * jax.random.normal(k, shape, dtype=jnp.float32)

    ks = jax.random.split(key, 3 + max(n_blocks, 1))
    params = {
        "emb": xavier_normal(ks[0], num_classes, num_classes,
                             (num_classes, num_classes)),
        "w_in": xavier_normal(ks[1], d_in, INTER_DIM, (d_in, INTER_DIM)),
        "b_in": jnp.zeros((1, INTER_DIM), jnp.float32),
        "w_out": xavier_normal(ks[2], INTER_DIM, 1, (INTER_DIM, 1)),
        "b_out": jnp.zeros((1, 1), jnp.float32),
    }
    if n_blocks > 0:
        params["w_h"] = jnp.stack([
            xavier_normal(ks[3 + i], INTER_DIM, INTER_DIM, (INTER_DIM, INTER_DIM))
            for i in range(n_blocks)])
    else:
        params["w_h"] = jnp.zeros((0, INTER_DIM, INTER_DIM), jnp.float32)
    params["b_h"] = jnp.zeros((n_blocks, 1, INTER_DIM), jnp.float32)
    # BatchNorm1d affine params + running stats (inference semantics)
    params["gamma"] = jnp.ones((n_blocks, 1, INTER_DIM), jnp.float32)
    params["beta"] = jnp.zeros((n_blocks, 1, INTER_DIM), jnp.float32)
    params["mean"] = jnp.zeros((n_blocks, 1, INTER_DIM), jnp.float32)
    params["var"] = jnp.ones((n_blocks, 1, INTER_DIM), jnp.float32)
    return params


def pack_params(params, in_shape, n_blocks):
    """Fold BN into the hidden Linears, cast weights to bf16, split the input
    Linear into an aligned image part + a pre-projected label table, and pad
    the output head to 128 lanes."""
    d_img = int(np.prod(in_shape))

    if n_blocks > 0:
        scale = params["gamma"] * jax.lax.rsqrt(params["var"] + BN_EPS)   # (n,1,512)
        w_h = (params["w_h"] * scale).astype(jnp.bfloat16)                # (n,512,512)
        b_h = scale * (params["b_h"] - params["mean"]) + params["beta"]   # (n,1,512) f32
    else:
        w_h = jnp.zeros((1, INTER_DIM, INTER_DIM), jnp.bfloat16)
        b_h = jnp.zeros((1, 1, INTER_DIM), jnp.float32)

    w_out = jnp.zeros((INTER_DIM, OUT_PAD), jnp.float32).at[:, :1].set(params["w_out"])
    b_out = jnp.zeros((1, OUT_PAD), jnp.float32).at[:, :1].set(params["b_out"])

    return {
        "w_in_img": params["w_in"][:d_img].astype(jnp.bfloat16),          # (d_img,512)
        "emb_proj": params["emb"] @ params["w_in"][d_img:],               # (C,512) f32
        "b_in": params["b_in"],                                           # (1,512) f32
        "w_h": w_h,
        "b_h": b_h,
        "w_out": w_out.astype(jnp.bfloat16),                              # (512,128)
        "b_out": b_out,                                                   # (1,128) f32
    }


def discriminator_forward(imgs, labels, packed, n_blocks):
    """imgs: (B, C, H, W) float; labels: (B,) int32. Returns (B, 1) scores."""
    B = imgs.shape[0]
    x = imgs.reshape(B, -1).astype(jnp.float32)                  # (B, d_img)
    d_img = x.shape[1]
    emb_add = jnp.take(packed["emb_proj"], labels, axis=0)       # (B, 512) f32

    grid_n = max(n_blocks, 1)
    kernel = functools.partial(discriminator_kernel, n_blocks > 0)

    out = pl.pallas_call(
        kernel,
        out_shape=jax.ShapeDtypeStruct((B, OUT_PAD), jnp.float32),
        grid_spec=pltpu.PrefetchScalarGridSpec(
            num_scalar_prefetch=0,
            grid=(grid_n,),
            in_specs=[
                pl.BlockSpec((B, d_img), lambda i: (0, 0)),                    # x
                pl.BlockSpec((B, INTER_DIM), lambda i: (0, 0)),                # emb_add
                pl.BlockSpec((d_img, INTER_DIM), lambda i: (0, 0)),            # w_in_img
                pl.BlockSpec((1, INTER_DIM), lambda i: (0, 0)),                # b_in
                pl.BlockSpec((1, INTER_DIM, INTER_DIM), lambda i: (i, 0, 0)),  # w_h[i]
                pl.BlockSpec((1, 1, INTER_DIM), lambda i: (i, 0, 0)),          # b_h[i]
                pl.BlockSpec((INTER_DIM, OUT_PAD), lambda i: (0, 0)),          # w_out
                pl.BlockSpec((1, OUT_PAD), lambda i: (0, 0)),                  # b_out
            ],
            out_specs=pl.BlockSpec((B, OUT_PAD), lambda i: (0, 0)),
            scratch_shapes=[pltpu.VMEM((B, INTER_DIM), jnp.float32)],
        ),
        compiler_params=pltpu.CompilerParams(
            dimension_semantics=("arbitrary",)),
    )(x, emb_add,
      packed["w_in_img"], packed["b_in"],
      packed["w_h"], packed["b_h"],
      packed["w_out"], packed["b_out"])
    return out[:, :1]


def discriminator_reference(imgs, labels, params, n_blocks):
    """Pure-JAX f32 reference following the original (unfused) module math."""
    B = imgs.shape[0]
    x = jnp.concatenate(
        [imgs.reshape(B, -1).astype(jnp.float32),
         jnp.take(params["emb"], labels, axis=0)], axis=-1)
    h = _leaky_relu(x @ params["w_in"] + params["b_in"])
    for i in range(n_blocks):
        z = h @ params["w_h"][i] + params["b_h"][i]
        z = params["gamma"][i] * (z - params["mean"][i]) * \
            jax.lax.rsqrt(params["var"][i] + BN_EPS) + params["beta"][i]
        h = _leaky_relu(z)
    return jax.nn.sigmoid(h @ params["w_out"] + params["b_out"])


if __name__ == "__main__":
    in_shape = (1, 16, 16)   # (C, H, W) -> d_img = 256 (lane-aligned)
    n_blocks = 2
    num_classes = 10
    batch = 4

    key = jax.random.PRNGKey(0)
    k_img, k_lab, k_par = jax.random.split(key, 3)

    imgs = jax.random.normal(k_img, (batch,) + in_shape, dtype=jnp.float32)
    labels = jax.random.randint(k_lab, (batch,), 0, num_classes, dtype=jnp.int32)

    params = init_params(k_par, in_shape, n_blocks, num_classes)
    packed = pack_params(params, in_shape, n_blocks)

    out = discriminator_forward(imgs, labels, packed, n_blocks)
    out = jax.block_until_ready(out)

    ref = discriminator_reference(imgs, labels, params, n_blocks)
    assert out.shape == (batch, 1)
    # bf16 weights / bf16 MXU feed => looser tolerance than a pure-f32 path
    np.testing.assert_allclose(np.asarray(out), np.asarray(ref),
                               rtol=2e-2, atol=2e-2)

    print("KERNEL_OK")
</pallas_src>

<mosaic_0001>
module attributes {stable_mosaic.version = 11 : i64} {
  func.func @discriminator_kernel(%arg0: i32, %arg1: memref<4x256xf32, #tpu.memory_space<vmem>>, %arg2: memref<4x512xf32, #tpu.memory_space<vmem>>, %arg3: memref<256x512xbf16, #tpu.memory_space<vmem>>, %arg4: memref<1x512xf32, #tpu.memory_space<vmem>>, %arg5: memref<1x512x512xbf16, #tpu.memory_space<vmem>>, %arg6: memref<1x1x512xf32, #tpu.memory_space<vmem>>, %arg7: memref<512x128xbf16, #tpu.memory_space<vmem>>, %arg8: memref<1x128xf32, #tpu.memory_space<vmem>>, %arg9: memref<4x128xf32, #tpu.memory_space<vmem>>, %arg10: memref<4x512xf32, #tpu.memory_space<vmem>>) attributes {dimension_semantics = [#tpu.dimension_semantics<arbitrary>], iteration_bounds = array<i64: 2>, scalar_prefetch = 0 : i64, scratch_operands = 1 : i64, tpu.core_type = #tpu.core_type<tc>, window_params = [{pipeline_mode = #tpu.pipeline_mode<synchronous>, transform_indices = @transform_0, window_bounds = array<i64: 4, 256>}, {pipeline_mode = #tpu.pipeline_mode<synchronous>, transform_indices = @transform_1, window_bounds = array<i64: 4, 512>}, {pipeline_mode = #tpu.pipeline_mode<synchronous>, transform_indices = @transform_2, window_bounds = array<i64: 256, 512>}, {pipeline_mode = #tpu.pipeline_mode<synchronous>, transform_indices = @transform_3, window_bounds = array<i64: 1, 512>}, {transform_indices = @transform_4, window_bounds = array<i64: 1, 512, 512>}, {transform_indices = @transform_5, window_bounds = array<i64: 1, 1, 512>}, {pipeline_mode = #tpu.pipeline_mode<synchronous>, transform_indices = @transform_6, window_bounds = array<i64: 512, 128>}, {pipeline_mode = #tpu.pipeline_mode<synchronous>, transform_indices = @transform_7, window_bounds = array<i64: 1, 128>}, {pipeline_mode = #tpu.pipeline_mode<synchronous>, transform_indices = @transform_8, window_bounds = array<i64: 4, 128>}]} {
    %c0_i32 = arith.constant 0 : i32
    %0 = arith.cmpi eq, %arg0, %c0_i32 : i32
    %1 = arith.extui %0 : i1 to i32
    %c0_i32_0 = arith.constant 0 : i32
    %2 = arith.cmpi ne, %1, %c0_i32_0 : i32
    scf.if %2 {
      %c0_13 = arith.constant 0 : index
      %c0_14 = arith.constant 0 : index
      %21 = vector.load %arg1[%c0_13, %c0_14] : memref<4x256xf32, #tpu.memory_space<vmem>>, vector<4x256xf32>
      %22 = arith.truncf %21 : vector<4x256xf32> to vector<4x256xbf16>
      %c0_15 = arith.constant 0 : index
      %c0_16 = arith.constant 0 : index
      %23 = vector.load %arg3[%c0_15, %c0_16] : memref<256x512xbf16, #tpu.memory_space<vmem>>, vector<256x512xbf16>
      %cst_17 = arith.constant dense<0.000000e+00> : vector<4x512xf32>
      %24 = tpu.matmul %22, %23, %cst_17 {dimension_numbers = #tpu.dot_dimension_numbers<[1], [0], [0], [1], [0, 0, 1, 1], [], []>} : vector<4x256xbf16>, vector<256x512xbf16>, vector<4x512xf32> -> vector<4x512xf32>
      %c0_18 = arith.constant 0 : index
      %c0_19 = arith.constant 0 : index
      %25 = vector.load %arg2[%c0_18, %c0_19] : memref<4x512xf32, #tpu.memory_space<vmem>>, vector<4x512xf32>
      %26 = arith.addf %24, %25 : vector<4x512xf32>
      %c0_20 = arith.constant 0 : index
      %c0_21 = arith.constant 0 : index
      %27 = vector.load %arg4[%c0_20, %c0_21] : memref<1x512xf32, #tpu.memory_space<vmem>>, vector<1x512xf32>
      %28 = vector.broadcast %27 : vector<1x512xf32> to vector<4x512xf32>
      %29 = arith.addf %26, %28 : vector<4x512xf32>
      %cst_22 = arith.constant 0.000000e+00 : f32
      %30 = vector.broadcast %cst_22 : f32 to vector<4x512xf32>
      %31 = arith.cmpf oge, %29, %30 : vector<4x512xf32>
      %cst_23 = arith.constant 2.000000e-01 : f32
      %32 = vector.broadcast %cst_23 : f32 to vector<4x512xf32>
      %33 = arith.mulf %32, %29 : vector<4x512xf32>
      %34 = arith.select %31, %29, %33 : vector<4x512xi1>, vector<4x512xf32>
      %c0_24 = arith.constant 0 : index
      %c0_25 = arith.constant 0 : index
      %35 = vector.load %arg10[%c0_24, %c0_25] : memref<4x512xf32, #tpu.memory_space<vmem>>, vector<4x512xf32>
      tpu.vector_store %arg10[%c0_24, %c0_25], %34 {strides = array<i32>} : memref<4x512xf32, #tpu.memory_space<vmem>>, vector<4x512xf32>,
    } else {
    }
    %c0 = arith.constant 0 : index
    %c0_1 = arith.constant 0 : index
    %3 = vector.load %arg10[%c0, %c0_1] : memref<4x512xf32, #tpu.memory_space<vmem>>, vector<4x512xf32>
    %4 = arith.truncf %3 : vector<4x512xf32> to vector<4x512xbf16>
    %c0_2 = arith.constant 0 : index
    %c0_3 = arith.constant 0 : index
    %c0_4 = arith.constant 0 : index
    %5 = vector.load %arg5[%c0_2, %c0_3, %c0_4] : memref<1x512x512xbf16, #tpu.memory_space<vmem>>, vector<1x512x512xbf16>
    %6 = vector.shape_cast %5 : vector<1x512x512xbf16> to vector<512x512xbf16>
    %cst = arith.constant dense<0.000000e+00> : vector<4x512xf32>
    %7 = tpu.matmul %4, %6, %cst {dimension_numbers = #tpu.dot_dimension_numbers<[1], [0], [0], [1], [0, 0, 1, 1], [], []>} : vector<4x512xbf16>, vector<512x512xbf16>, vector<4x512xf32> -> vector<4x512xf32>
    %c0_5 = arith.constant 0 : index
    %c0_6 = arith.constant 0 : index
    %c0_7 = arith.constant 0 : index
    %8 = vector.load %arg6[%c0_5, %c0_6, %c0_7] : memref<1x1x512xf32, #tpu.memory_space<vmem>>, vector<1x1x512xf32>
    %9 = vector.shape_cast %8 : vector<1x1x512xf32> to vector<1x512xf32>
    %10 = vector.broadcast %9 : vector<1x512xf32> to vector<4x512xf32>
    %11 = arith.addf %7, %10 : vector<4x512xf32>
    %cst_8 = arith.constant 0.000000e+00 : f32
    %12 = vector.broadcast %cst_8 : f32 to vector<4x512xf32>
    %13 = arith.cmpf oge, %11, %12 : vector<4x512xf32>
    %cst_9 = arith.constant 2.000000e-01 : f32
    %14 = vector.broadcast %cst_9 : f32 to vector<4x512xf32>
    %15 = arith.mulf %14, %11 : vector<4x512xf32>
    %16 = arith.select %13, %11, %15 : vector<4x512xi1>, vector<4x512xf32>
    %c0_10 = arith.constant 0 : index
    %c0_11 = arith.constant 0 : index
    %17 = vector.load %arg10[%c0_10, %c0_11] : memref<4x512xf32, #tpu.memory_space<vmem>>, vector<4x512xf32>
    tpu.vector_store %arg10[%c0_10, %c0_11], %16 {strides = array<i32>} : memref<4x512xf32, #tpu.memory_space<vmem>>, vector<4x512xf32>,
    %c1_i32 = arith.constant 1 : i32
    %18 = arith.cmpi eq, %arg0, %c1_i32 : i32
    %19 = arith.extui %18 : i1 to i32
    %c0_i32_12 = arith.constant 0 : i32
    %20 = arith.cmpi ne, %19, %c0_i32_12 : i32
    scf.if %20 {
      %c0_13 = arith.constant 0 : index
      %c0_14 = arith.constant 0 : index
      %21 = vector.load %arg10[%c0_13, %c0_14] : memref<4x512xf32, #tpu.memory_space<vmem>>, vector<4x512xf32>
      %22 = arith.truncf %21 : vector<4x512xf32> to vector<4x512xbf16>
      %c0_15 = arith.constant 0 : index
      %c0_16 = arith.constant 0 : index
      %23 = vector.load %arg7[%c0_15, %c0_16] : memref<512x128xbf16, #tpu.memory_space<vmem>>, vector<512x128xbf16>
      %cst_17 = arith.constant dense<0.000000e+00> : vector<4x128xf32>
      %24 = tpu.matmul %22, %23, %cst_17 {dimension_numbers = #tpu.dot_dimension_numbers<[1], [0], [0], [1], [0, 0, 1, 1], [], []>} : vector<4x512xbf16>, vector<512x128xbf16>, vector<4x128xf32> -> vector<4x128xf32>
      %c0_18 = arith.constant 0 : index
      %c0_19 = arith.constant 0 : index
      %25 = vector.load %arg8[%c0_18, %c0_19] : memref<1x128xf32, #tpu.memory_space<vmem>>, vector<1x128xf32>
      %26 = vector.broadcast %25 : vector<1x128xf32> to vector<4x128xf32>
      %27 = arith.addf %24, %26 : vector<4x128xf32>
      %cst_20 = arith.constant 0.000000e+00 : f32
      %28 = vector.broadcast %cst_20 : f32 to vector<4x128xf32>
      %29 = arith.subf %28, %27 : vector<4x128xf32>
      %30 = math.exp %29 : vector<4x128xf32>
      %cst_21 = arith.constant 1.000000e+00 : f32
      %31 = vector.broadcast %cst_21 : f32 to vector<4x128xf32>
      %32 = arith.addf %31, %30 : vector<4x128xf32>
      %33 = tpu.reciprocal %32 {approx = true} : vector<4x128xf32> -> vector<4x128xf32>
      %c0_22 = arith.constant 0 : index
      %c0_23 = arith.constant 0 : index
      %34 = vector.load %arg9[%c0_22, %c0_23] : memref<4x128xf32, #tpu.memory_space<vmem>>, vector<4x128xf32>
      tpu.vector_store %arg9[%c0_22, %c0_23], %33 {strides = array<i32>} : memref<4x128xf32, #tpu.memory_space<vmem>>, vector<4x128xf32>,
    } else {
    }
    return
  }
  func.func @transform_0(%arg0: i32) -> (i32, i32) {
    %c0_i32 = arith.constant 0 : i32
    %c0_i32_0 = arith.constant 0 : i32
    %c0_i32_1 = arith.constant 0 : i32
    return %c0_i32, %c0_i32_0 : i32, i32
  }
  func.func @transform_1(%arg0: i32) -> (i32, i32) {
    %c0_i32 = arith.constant 0 : i32
    %c0_i32_0 = arith.constant 0 : i32
    %c0_i32_1 = arith.constant 0 : i32
    return %c0_i32, %c0_i32_0 : i32, i32
  }
  func.func @transform_2(%arg0: i32) -> (i32, i32) {
    %c0_i32 = arith.constant 0 : i32
    %c0_i32_0 = arith.constant 0 : i32
    %c0_i32_1 = arith.constant 0 : i32
    return %c0_i32, %c0_i32_0 : i32, i32
  }
  func.func @transform_3(%arg0: i32) -> (i32, i32) {
    %c0_i32 = arith.constant 0 : i32
    %c0_i32_0 = arith.constant 0 : i32
    %c0_i32_1 = arith.constant 0 : i32
    return %c0_i32, %c0_i32_0 : i32, i32
  }
  func.func @transform_4(%arg0: i32) -> (i32, i32, i32) {
    %c0_i32 = arith.constant 0 : i32
    %c0_i32_0 = arith.constant 0 : i32
    %c0_i32_1 = arith.constant 0 : i32
    return %arg0, %c0_i32, %c0_i32_0 : i32, i32, i32
  }
  func.func @transform_5(%arg0: i32) -> (i32, i32, i32) {
    %c0_i32 = arith.constant 0 : i32
    %c0_i32_0 = arith.constant 0 : i32
    %c0_i32_1 = arith.constant 0 : i32
    return %arg0, %c0_i32, %c0_i32_0 : i32, i32, i32
  }
  func.func @transform_6(%arg0: i32) -> (i32, i32) {
    %c0_i32 = arith.constant 0 : i32
    %c0_i32_0 = arith.constant 0 : i32
    %c0_i32_1 = arith.constant 0 : i32
    return %c0_i32, %c0_i32_0 : i32, i32
  }
  func.func @transform_7(%arg0: i32) -> (i32, i32) {
    %c0_i32 = arith.constant 0 : i32
    %c0_i32_0 = arith.constant 0 : i32
    %c0_i32_1 = arith.constant 0 : i32
    return %c0_i32, %c0_i32_0 : i32, i32
  }
  func.func @transform_8(%arg0: i32) -> (i32, i32) {
    %c0_i32 = arith.constant 0 : i32
    %c0_i32_0 = arith.constant 0 : i32
    %c0_i32_1 = arith.constant 0 : i32
    return %c0_i32, %c0_i32_0 : i32, i32
  }
}

</mosaic_0001>

<llo_original>
// kernel: tpu_custom_call.1
$region0: #{tpu_custom_call.1}
  #allocation0 [shape = 'u32[]', space=smem, size = 0x4, offset = 0x4, fixed_abs, tag = 'smem constant byte address 0x4 - core index']
  #allocation1 [shape = 'u32[144,128]{1,0:T(1,128)}', space=vmem, size = 0x12000, scoped, tag = 'internal scratch']
  #allocation2 [shape = 'f32[4,512]{1,0:T(4,128)}', space=vmem, size = 0x2000, scoped, tag = 'scratch operand']
  %s0 = inlined_call_operand.hbm [shape: f32[4,256], index: 0, kind: input, shape index: {}]
  %s1 = inlined_call_operand.hbm [shape: f32[4,512], index: 1, kind: input, shape index: {}]
  %s2 = inlined_call_operand.hbm [shape: bf16[256,512], index: 2, kind: input, shape index: {}]
  %s3 = inlined_call_operand.vmem [shape: f32[1,512], index: 3, kind: input, shape index: {}]
  %s4 = inlined_call_operand.hbm [shape: bf16[2,512,512], index: 4, kind: input, shape index: {}]
  %s5 = inlined_call_operand.vmem [shape: f32[2,1,512], index: 5, kind: input, shape index: {}]
  %s6 = inlined_call_operand.hbm [shape: bf16[512,128], index: 6, kind: input, shape index: {}]
  %s7 = inlined_call_operand.vmem [shape: f32[1,128], index: 7, kind: input, shape index: {}]
  %s8 = inlined_call_operand.hbm [shape: f32[4,128], index: 8, kind: output, shape index: {}]
  %s9 = sld [smem:[#allocation0]]
  $region93: #{tpu_custom_call.1} parent=0
    _
  %s11 = ssub.s32 1, %s9
  %s12 = scalar_select 0, %s11, %s9
  $region1: #{tpu_custom_call.1} parent=0
    #allocation3 [shape = 'u8[4096]{0}', space=vmem, size = 0x1000, scoped, tag = 'input window, operand 0, single buffered']
    #allocation4 [shape = 's32[2]{0}', space=sflag, size = 0x8, scoped, tag = 'scoped memory for tpu_custom_call.1']
    #allocation5 [shape = 's32[2]{0}', space=sflag, size = 0x8, scoped, tag = 'scoped memory for tpu_custom_call.1']
    #allocation6 [shape = 'u8[8192]{0}', space=vmem, size = 0x2000, scoped, tag = 'input window, operand 1, single buffered']
    #allocation7 [shape = 's32[1]{0}', space=sflag, size = 0x4, scoped, tag = 'scoped memory for tpu_custom_call.1']
    #allocation8 [shape = 'u8[262144]{0}', space=vmem, size = 0x40000, scoped, tag = 'input window, operand 2, single buffered']
    #allocation9 [shape = 'u8[1048576]{0}', space=vmem, size = 0x100000, scoped, tag = 'input window, operand 4']
    #allocation10 [shape = 's32[2]{0}', space=sflag, size = 0x8, scoped, tag = 'scoped memory for tpu_custom_call.1']
    #allocation11 [shape = 'u8[131072]{0}', space=vmem, size = 0x20000, scoped, tag = 'input window, operand 6, single buffered']
    #allocation12 [shape = 'u8[2048]{0}', space=vmem, size = 0x800, scoped, tag = 'output window, operand 0, single buffered']
    %13 = vsyncpa [#allocation4], 0
    %14 = vsyncpa [#allocation7], 0
    %15 = vsyncpa [#allocation10], 0
    %s16 = scalar_lea.sflag [#allocation10], 1
    %17 = vsyncpa %s16, 0
    %18 = vsyncpa [#allocation5], 0
    loop: start=0, step=1, limit=4
    $region2: #{tpu_custom_call.1} parent=1 // loop_pre_header
      _
    $region3: #{tpu_custom_call.1} parent=1 // loop_header
      %s20 = sphi 0, %s24
      %p21 = scmp.ge.s32.totalorder %s20, 4
      %s28 = sphi 0, %s28
      %s30 = sphi 0, %s28
      %s31 = sphi 0, %s30
      %s45 = sphi 0, %s31
      %s49 = sphi 0, %s49
      %s51 = sphi 0, %s49
      %s52 = sphi 0, %s51
      %s66 = sphi 0, %s52
      %s70 = sphi 0, %s70
      %s72 = sphi 0, %s70
      %s73 = sphi 0, %s72
      %s87 = sphi 0, %s73
      %s91 = sphi 0, %s91
      %s93 = sphi 0, %s91
      %s94 = sphi 0, %s93
      %s108 = sphi 0, %s94
      %s114 = sphi 0, %s116
      %s117 = sphi 0, %s114
      %s118 = sphi 0, %s117
      %s134 = sphi 0, %s118
      %s140 = sphi 0, %s142
      %s143 = sphi 0, %s140
      %s144 = sphi 0, %s143
      %s160 = sphi 0, %s144
      %s164 = sphi 0, %s164
      %s166 = sphi 0, %s164
      %s167 = sphi 0, %s166
      %s181 = sphi 0, %s167
      %s185 = sphi 0, %s185
      %s187 = sphi 0, %s185
      %s188 = sphi 0, %s187
      %s202 = sphi 0, %s188
      %s206 = sphi 0, %s206
      %s208 = sphi 0, %s206
      %s209 = sphi 0, %s208
      %s223 = sphi 0, %s209
    $region4: #{tpu_custom_call.1} parent=1 // loop_header_branch
      %23 = sbr.rel (%p21) target = $region8
    $region5: #{tpu_custom_call.1} parent=1 // loop_body
      %s25 = ssub.s32 %s20, 1
      %s26 = ssub.s32 %s20, 2
      %s27 = sadd.s32 %s20, 1
      %s29 = sadd.s32 %s28, 1
      %p32 = scmp.eq.s32.totalorder %s20, 1
      %p33 = scmp.ne.s32.totalorder %s28, %s30
      %p34 = scmp.eq.s32.totalorder %s20, 0
      %p35 = por %p33, %p34
      %p36 = scmp.ne.s32.totalorder %s28, %s30
      %p37 = scmp.eq.s32.totalorder %s25, 1
      %p38 = por %p36, %p37
      %p39 = scmp.ne.s32.totalorder %s30, %s31
      %p40 = scmp.eq.s32.totalorder %s25, 0
      %p41 = por %p39, %p40
      %p42 = scmp.ne.s32.totalorder %s30, %s31
      %p43 = scmp.eq.s32.totalorder %s26, 1
      %p44 = por %p42, %p43
      %p46 = scmp.ne.s32.totalorder %s31, %s45
      %p47 = scmp.eq.s32.totalorder %s26, 0
      %p48 = por %p46, %p47
      %s50 = sadd.s32 %s49, 1
      %p53 = scmp.eq.s32.totalorder %s20, 1
      %p54 = scmp.ne.s32.totalorder %s49, %s51
      %p55 = scmp.eq.s32.totalorder %s20, 0
      %p56 = por %p54, %p55
      %p57 = scmp.ne.s32.totalorder %s49, %s51
      %p58 = scmp.eq.s32.totalorder %s25, 1
      %p59 = por %p57, %p58
      %p60 = scmp.ne.s32.totalorder %s51, %s52
      %p61 = scmp.eq.s32.totalorder %s25, 0
      %p62 = por %p60, %p61
      %p63 = scmp.ne.s32.totalorder %s51, %s52
      %p64 = scmp.eq.s32.totalorder %s26, 1
      %p65 = por %p63, %p64
      %p67 = scmp.ne.s32.totalorder %s52, %s66
      %p68 = scmp.eq.s32.totalorder %s26, 0
      %p69 = por %p67, %p68
      %s71 = sadd.s32 %s70, 1
      %p74 = scmp.eq.s32.totalorder %s20, 1
      %p75 = scmp.ne.s32.totalorder %s70, %s72
      %p76 = scmp.eq.s32.totalorder %s20, 0
      %p77 = por %p75, %p76
      %p78 = scmp.ne.s32.totalorder %s70, %s72
      %p79 = scmp.eq.s32.totalorder %s25, 1
      %p80 = por %p78, %p79
      %p81 = scmp.ne.s32.totalorder %s72, %s73
      %p82 = scmp.eq.s32.totalorder %s25, 0
      %p83 = por %p81, %p82
      %p84 = scmp.ne.s32.totalorder %s72, %s73
      %p85 = scmp.eq.s32.totalorder %s26, 1
      %p86 = por %p84, %p85
      %p88 = scmp.ne.s32.totalorder %s73, %s87
      %p89 = scmp.eq.s32.totalorder %s26, 0
      %p90 = por %p88, %p89
      %s92 = sadd.s32 %s91, 1
      %p95 = scmp.eq.s32.totalorder %s20, 1
      %p96 = scmp.ne.s32.totalorder %s91, %s93
      %p97 = scmp.eq.s32.totalorder %s20, 0
      %p98 = por %p96, %p97
      %p99 = scmp.ne.s32.totalorder %s91, %s93
      %p100 = scmp.eq.s32.totalorder %s25, 1
      %p101 = por %p99, %p100
      %p102 = scmp.ne.s32.totalorder %s93, %s94
      %p103 = scmp.eq.s32.totalorder %s25, 0
      %p104 = por %p102, %p103
      %p105 = scmp.ne.s32.totalorder %s93, %s94
      %p106 = scmp.eq.s32.totalorder %s26, 1
      %p107 = por %p105, %p106
      %p109 = scmp.ne.s32.totalorder %s94, %s108
      %p110 = scmp.eq.s32.totalorder %s26, 0
      %p111 = por %p109, %p110
      %s112 = ssub.s32 %s20, %s27
      %p113 = scmp.eq.s32.totalorder %s112, 0
      %s115 = sadd.s32 %s114, 1
      %s116 = scalar_select %p113, %s114, %s115
      %p119 = pneg %p113
      %p120 = scmp.eq.s32.totalorder %s20, 1
      %p121 = por %p119, %p120
      %p122 = scmp.ne.s32.totalorder %s114, %s117
      %p123 = scmp.eq.s32.totalorder %s20, 0
      %p124 = por %p122, %p123
      %p125 = scmp.ne.s32.totalorder %s114, %s117
      %p126 = scmp.eq.s32.totalorder %s25, 1
      %p127 = por %p125, %p126
      %p128 = scmp.ne.s32.totalorder %s117, %s118
      %p129 = scmp.eq.s32.totalorder %s25, 0
      %p130 = por %p128, %p129
      %p131 = scmp.ne.s32.totalorder %s117, %s118
      %p132 = scmp.eq.s32.totalorder %s26, 1
      %p133 = por %p131, %p132
      %p135 = scmp.ne.s32.totalorder %s118, %s134
      %p136 = scmp.eq.s32.totalorder %s26, 0
      %p137 = por %p135, %p136
      %s138 = ssub.s32 %s20, %s27
      %p139 = scmp.eq.s32.totalorder %s138, 0
      %s141 = sadd.s32 %s140, 1
      %s142 = scalar_select %p139, %s140, %s141
      %p145 = pneg %p139
      %p146 = scmp.eq.s32.totalorder %s20, 1
      %p147 = por %p145, %p146
      %p148 = scmp.ne.s32.totalorder %s140, %s143
      %p149 = scmp.eq.s32.totalorder %s20, 0
      %p150 = por %p148, %p149
      %p151 = scmp.ne.s32.totalorder %s140, %s143
      %p152 = scmp.eq.s32.totalorder %s25, 1
      %p153 = por %p151, %p152
      %p154 = scmp.ne.s32.totalorder %s143, %s144
      %p155 = scmp.eq.s32.totalorder %s25, 0
      %p156 = por %p154, %p155
      %p157 = scmp.ne.s32.totalorder %s143, %s144
      %p158 = scmp.eq.s32.totalorder %s26, 1
      %p159 = por %p157, %p158
      %p161 = scmp.ne.s32.totalorder %s144, %s160
      %p162 = scmp.eq.s32.totalorder %s26, 0
      %p163 = por %p161, %p162
      %s165 = sadd.s32 %s164, 1
      %p168 = scmp.eq.s32.totalorder %s20, 1
      %p169 = scmp.ne.s32.totalorder %s164, %s166
      %p170 = scmp.eq.s32.totalorder %s20, 0
      %p171 = por %p169, %p170
      %p172 = scmp.ne.s32.totalorder %s164, %s166
      %p173 = scmp.eq.s32.totalorder %s25, 1
      %p174 = por %p172, %p173
      %p175 = scmp.ne.s32.totalorder %s166, %s167
      %p176 = scmp.eq.s32.totalorder %s25, 0
      %p177 = por %p175, %p176
      %p178 = scmp.ne.s32.totalorder %s166, %s167
      %p179 = scmp.eq.s32.totalorder %s26, 1
      %p180 = por %p178, %p179
      %p182 = scmp.ne.s32.totalorder %s167, %s181
      %p183 = scmp.eq.s32.totalorder %s26, 0
      %p184 = por %p182, %p183
      %s186 = sadd.s32 %s185, 1
      %p189 = scmp.eq.s32.totalorder %s20, 1
      %p190 = scmp.ne.s32.totalorder %s185, %s187
      %p191 = scmp.eq.s32.totalorder %s20, 0
      %p192 = por %p190, %p191
      %p193 = scmp.ne.s32.totalorder %s185, %s187
      %p194 = scmp.eq.s32.totalorder %s25, 1
      %p195 = por %p193, %p194
      %p196 = scmp.ne.s32.totalorder %s187, %s188
      %p197 = scmp.eq.s32.totalorder %s25, 0
      %p198 = por %p196, %p197
      %p199 = scmp.ne.s32.totalorder %s187, %s188
      %p200 = scmp.eq.s32.totalorder %s26, 1
      %p201 = por %p199, %p200
      %p203 = scmp.ne.s32.totalorder %s188, %s202
      %p204 = scmp.eq.s32.totalorder %s26, 0
      %p205 = por %p203, %p204
      %s207 = sadd.s32 %s206, 1
      %p210 = scmp.eq.s32.totalorder %s20, 1
      %p211 = scmp.ne.s32.totalorder %s206, %s208
      %p212 = scmp.eq.s32.totalorder %s20, 0
      %p213 = por %p211, %p212
      %p214 = scmp.ne.s32.totalorder %s206, %s208
      %p215 = scmp.eq.s32.totalorder %s25, 1
      %p216 = por %p214, %p215
      %p217 = scmp.ne.s32.totalorder %s208, %s209
      %p218 = scmp.eq.s32.totalorder %s25, 0
      %p219 = por %p217, %p218
      %p220 = scmp.ne.s32.totalorder %s208, %s209
      %p221 = scmp.eq.s32.totalorder %s26, 1
      %p222 = por %p220, %p221
      %p224 = scmp.ne.s32.totalorder %s209, %s223
      %p225 = scmp.eq.s32.totalorder %s26, 0
      %p226 = por %p224, %p225
      %p227 = scmp.le.s32.totalorder 1, %s20
      %p228 = scmp.lt.s32.totalorder %s20, 3
      %p229 = pnand %p227, %p228
      %p230 = pneg %p229
      // Predicated region
      $region9: #{tpu_custom_call.1} parent=5 // pred_check
        _
      $region10: #{tpu_custom_call.1} parent=5 // pred_check_branch
        %232 = sbr.rel (%p229) target = $region12
      $region11: #{tpu_custom_call.1} parent=5 // pred_region
        %s233 = ssub.s32 %s20, 1
        // Predicated region
        $region13: #{tpu_custom_call.1} parent=11 // pred_check
          %p234 = pneg %p41
        $region14: #{tpu_custom_call.1} parent=11 // pred_check_branch
          %236 = sbr.rel (%p234) target = $region16
        $region15: #{tpu_custom_call.1} parent=11 // pred_region
          %s238 = ssub.s32 128, 128
          %239 = vsyncadd [#allocation4], %s238
          %s241 = sshll.u32 [#allocation3], 4
          %s242 = int_to_ptr.vmem [resolvable:$true] %s241
          %244 = dma.hbm_to_vmem [thread:$0]  %s0, 128, %s242, [#allocation4]
        $region16: #{tpu_custom_call.1} parent=11 // pred_fallthru
          _
        // Predicated region
        $region17: #{tpu_custom_call.1} parent=11 // pred_check
          %p245 = pneg %p62
        $region18: #{tpu_custom_call.1} parent=11 // pred_check_branch
          %247 = sbr.rel (%p245) target = $region20
        $region19: #{tpu_custom_call.1} parent=11 // pred_region
          %s249 = ssub.s32 256, 256
          %250 = vsyncadd [#allocation7], %s249
          %s252 = sshll.u32 [#allocation6], 4
          %s253 = int_to_ptr.vmem [resolvable:$true] %s252
          %255 = dma.hbm_to_vmem [thread:$0]  %s1, 256, %s253, [#allocation7]
        $region20: #{tpu_custom_call.1} parent=11 // pred_fallthru
          _
        // Predicated region
        $region21: #{tpu_custom_call.1} parent=11 // pred_check
          %p256 = pneg %p83
        $region22: #{tpu_custom_call.1} parent=11 // pred_check_branch
          %258 = sbr.rel (%p256) target = $region24
        $region23: #{tpu_custom_call.1} parent=11 // pred_region
          %s260 = ssub.s32 8192, 8192
          %261 = vsyncadd [#allocation7], %s260
          %s262 = sshll.u32 [#allocation8], 4
          %s263 = int_to_ptr.vmem [resolvable:$true] %s262
          %268 = dma.hbm_to_vmem [thread:$0]  %s2, 8192, %s263, [#allocation7], 256, 256, 16
        $region24: #{tpu_custom_call.1} parent=11 // pred_fallthru
          _
        // Predicated region
        $region25: #{tpu_custom_call.1} parent=11 // pred_check
          %p269 = pneg %p104
        $region26: #{tpu_custom_call.1} parent=11 // pred_check_branch
          %271 = sbr.rel (%p269) target = $region28
        $region27: #{tpu_custom_call.1} parent=11 // pred_region
          _
        $region28: #{tpu_custom_call.1} parent=11 // pred_fallthru
          _
        // Predicated region
        $region29: #{tpu_custom_call.1} parent=11 // pred_check
          %p272 = pneg %p177
        $region30: #{tpu_custom_call.1} parent=11 // pred_check_branch
          %274 = sbr.rel (%p272) target = $region32
        $region31: #{tpu_custom_call.1} parent=11 // pred_region
          %s276 = ssub.s32 4096, 4096
          %277 = vsyncadd [#allocation10], %s276
          %s278 = sshll.u32 [#allocation11], 4
          %s279 = int_to_ptr.vmem [resolvable:$true] %s278
          %284 = dma.hbm_to_vmem [thread:$0]  %s6, 4096, %s279, [#allocation10], 64, 64, 4
        $region32: #{tpu_custom_call.1} parent=11 // pred_fallthru
          _
        // Predicated region
        $region33: #{tpu_custom_call.1} parent=11 // pred_check
          %p285 = pneg %p198
        $region34: #{tpu_custom_call.1} parent=11 // pred_check_branch
          %287 = sbr.rel (%p285) target = $region36
        $region35: #{tpu_custom_call.1} parent=11 // pred_region
          _
        $region36: #{tpu_custom_call.1} parent=11 // pred_fallthru
          _
      $region12: #{tpu_custom_call.1} parent=5 // pred_fallthru
        _
      %p288 = scmp.lt.s32.totalorder %s20, 2
      // Predicated region
      $region37: #{tpu_custom_call.1} parent=5 // pred_check
        %p289 = pneg %p288
      $region38: #{tpu_custom_call.1} parent=5 // pred_check_branch
        %291 = sbr.rel (%p289) target = $region40
      $region39: #{tpu_custom_call.1} parent=5 // pred_region
        // Predicated region
        $region41: #{tpu_custom_call.1} parent=39 // pred_check
          %p292 = pneg %p124
        $region42: #{tpu_custom_call.1} parent=39 // pred_check_branch
          %294 = sbr.rel (%p292) target = $region44
        $region43: #{tpu_custom_call.1} parent=39 // pred_region
          %s295 = sand.u32 %s20, 1
          %s296 = scalar_lea.sflag [#allocation10], %s295
          %s297 = sand.u32 %s114, 1
          %s298 = smul.addr %s297, 1024
          %s299 = scalar_lea.vmem [#allocation9], %s298
          %s301 = ssub.s32 16384, 16384
          %302 = vsyncadd %s296, %s301
          %s303 = smul.addr %s20, 256
          %s304 = smul.addr %s303, 64
          %s305 = scalar_lea.hbm %s4, %s304
          %s306 = sshll.u32 %s299, 4
          %s307 = int_to_ptr.vmem [resolvable:$true] %s306
          %312 = dma.hbm_to_vmem [thread:$0]  %s305, 16384, %s307, %s296, 256, 256, 16
        $region44: #{tpu_custom_call.1} parent=39 // pred_fallthru
          _
        // Predicated region
        $region45: #{tpu_custom_call.1} parent=39 // pred_check
          %p313 = pneg %p150
        $region46: #{tpu_custom_call.1} parent=39 // pred_check_branch
          %315 = sbr.rel (%p313) target = $region48
        $region47: #{tpu_custom_call.1} parent=39 // pred_region
          %p316 = scmp.lt.s32.totalorder %s20, 1
          %s317 = scalar_select %p316, %s20, 1
          %s318 = smul.addr %s317, 4
          %s319 = scalar_lea.vmem %s5, %s318
        $region48: #{tpu_custom_call.1} parent=39 // pred_fallthru
          _
      $region40: #{tpu_custom_call.1} parent=5 // pred_fallthru
        _
      %p320 = scmp.le.s32.totalorder 1, %s20
      %p321 = scmp.lt.s32.totalorder %s20, 3
      %p322 = pnand %p320, %p321
      %p323 = pneg %p322
      // Predicated region
      $region49: #{tpu_custom_call.1} parent=5 // pred_check
        _
      $region50: #{tpu_custom_call.1} parent=5 // pred_check_branch
        %325 = sbr.rel (%p322) target = $region52
      $region51: #{tpu_custom_call.1} parent=5 // pred_region
        %s326 = ssub.s32 %s20, 1
        // Predicated region
        $region53: #{tpu_custom_call.1} parent=51 // pred_check
          %p327 = pneg %p41
        $region54: #{tpu_custom_call.1} parent=51 // pred_check_branch
          %329 = sbr.rel (%p327) target = $region56
        $region55: #{tpu_custom_call.1} parent=51 // pred_region
          %330 = dma.done [#allocation4], 128
        $region56: #{tpu_custom_call.1} parent=51 // pred_fallthru
          _
        // Predicated region
        $region57: #{tpu_custom_call.1} parent=51 // pred_check
          %p331 = pneg %p62
        $region58: #{tpu_custom_call.1} parent=51 // pred_check_branch
          %333 = sbr.rel (%p331) target = $region60
        $region59: #{tpu_custom_call.1} parent=51 // pred_region
          %334 = dma.done [#allocation7], 256
        $region60: #{tpu_custom_call.1} parent=51 // pred_fallthru
          _
        // Predicated region
        $region61: #{tpu_custom_call.1} parent=51 // pred_check
          %p335 = pneg %p83
        $region62: #{tpu_custom_call.1} parent=51 // pred_check_branch
          %337 = sbr.rel (%p335) target = $region64
        $region63: #{tpu_custom_call.1} parent=51 // pred_region
          %338 = dma.done [#allocation7], 8192
        $region64: #{tpu_custom_call.1} parent=51 // pred_fallthru
          _
        %s339 = sand.u32 %s25, 1
        %s340 = scalar_lea.sflag [#allocation10], %s339
        %s341 = sand.u32 %s117, 1
        %s342 = smul.addr %s341, 1024
        %s343 = scalar_lea.vmem [#allocation9], %s342
        // Predicated region
        $region65: #{tpu_custom_call.1} parent=51 // pred_check
          %p344 = pneg %p130
        $region66: #{tpu_custom_call.1} parent=51 // pred_check_branch
          %346 = sbr.rel (%p344) target = $region68
        $region67: #{tpu_custom_call.1} parent=51 // pred_region
          %347 = dma.done %s340, 16384
        $region68: #{tpu_custom_call.1} parent=51 // pred_fallthru
          _
        // Predicated region
        $region69: #{tpu_custom_call.1} parent=51 // pred_check
          %p348 = pneg %p177
        $region70: #{tpu_custom_call.1} parent=51 // pred_check_branch
          %350 = sbr.rel (%p348) target = $region72
        $region71: #{tpu_custom_call.1} parent=51 // pred_region
          %351 = dma.done [#allocation10], 4096
        $region72: #{tpu_custom_call.1} parent=51 // pred_fallthru
          _
        %p352 = pneg %p41
        %p353 = pneg %p38
        %p354 = pneg %p62
        %p355 = pneg %p59
        %p356 = pneg %p83
        %p357 = pneg %p80
        %p358 = pneg %p104
        %p359 = pneg %p101
        %s360 = sand.u32 %s25, 1
        %s361 = scalar_lea.sflag [#allocation10], %s360
        %s362 = sand.u32 %s117, 1
        %s363 = smul.addr %s362, 1024
        %s364 = scalar_lea.vmem [#allocation9], %s363
        %p365 = pneg %p130
        %p366 = pneg %p127
        %p367 = scmp.lt.s32.totalorder %s25, 1
        %s368 = scalar_select %p367, %s25, 1
        %s369 = smul.addr %s368, 4
        %s370 = scalar_lea.vmem %s5, %s369
        %p371 = pneg %p156
        %p372 = pneg %p153
        %p373 = pneg %p177
        %p374 = pneg %p174
        %p375 = pneg %p198
        %p376 = pneg %p195
        %p377 = pneg %p219
        %p378 = pneg %p216
        %p379 = scmp.lt.s32.totalorder %s25, 1
        %s380 = scalar_select %p379, %s25, 1
        %s381 = smul.addr %s380, 4
        %s382 = scalar_lea.vmem %s5, %s381
        %p384 = scmp.eq.s32.totalorder %s25, 0
        // Predicated region
        $region73: #{tpu_custom_call.1} parent=51 // pred_check
          %p385 = pneg %p384
        $region74: #{tpu_custom_call.1} parent=51 // pred_check_branch
          %387 = sbr.rel (%p385) target = $region76
        $region75: #{tpu_custom_call.1} parent=51 // pred_region
          %v388 = vld [vmem:[#allocation3] sm:$0xff]
          %v390 = vcombine.high %v388, %v388
          %v392 = vpack.c.bf16 %v388, %v388
          %v393 = vpack.c.bf16 %v390, %v390
          %v394 = vld [vmem:[#allocation8] sm:$0xff]
          %v395 = vld [vmem:[#allocation8 + $0x8] sm:$0xff]
          %v396 = vld [vmem:[#allocation8 + $0x10] sm:$0xff]
          %v397 = vld [vmem:[#allocation8 + $0x18] sm:$0xff]
          %v398 = vld [vmem:[#allocation8 + $0x20] sm:$0xff]
          %v399 = vld [vmem:[#allocation8 + $0x28] sm:$0xff]
          %v400 = vld [vmem:[#allocation8 + $0x30] sm:$0xff]
          %v401 = vld [vmem:[#allocation8 + $0x38] sm:$0xff]
          %v402 = vld [vmem:[#allocation8 + $0x40] sm:$0xff]
          %v403 = vld [vmem:[#allocation8 + $0x48] sm:$0xff]
          %v404 = vld [vmem:[#allocation8 + $0x50] sm:$0xff]
          %v405 = vld [vmem:[#allocation8 + $0x58] sm:$0xff]
          %v406 = vld [vmem:[#allocation8 + $0x60] sm:$0xff]
          %v407 = vld [vmem:[#allocation8 + $0x68] sm:$0xff]
          %v408 = vld [vmem:[#allocation8 + $0x70] sm:$0xff]
          %v409 = vld [vmem:[#allocation8 + $0x78] sm:$0xff]
          %v410 = vld [vmem:[#allocation8 + $0x80] sm:$0xff]
          %v411 = vld [vmem:[#allocation8 + $0x88] sm:$0xff]
          %v412 = vld [vmem:[#allocation8 + $0x90] sm:$0xff]
          %v413 = vld [vmem:[#allocation8 + $0x98] sm:$0xff]
          %v414 = vld [vmem:[#allocation8 + $0xa0] sm:$0xff]
          %v415 = vld [vmem:[#allocation8 + $0xa8] sm:$0xff]
          %v416 = vld [vmem:[#allocation8 + $0xb0] sm:$0xff]
          %v417 = vld [vmem:[#allocation8 + $0xb8] sm:$0xff]
          %v418 = vld [vmem:[#allocation8 + $0xc0] sm:$0xff]
          %v419 = vld [vmem:[#allocation8 + $0xc8] sm:$0xff]
          %v420 = vld [vmem:[#allocation8 + $0xd0] sm:$0xff]
          %v421 = vld [vmem:[#allocation8 + $0xd8] sm:$0xff]
          %v422 = vld [vmem:[#allocation8 + $0xe0] sm:$0xff]
          %v423 = vld [vmem:[#allocation8 + $0xe8] sm:$0xff]
          %v424 = vld [vmem:[#allocation8 + $0xf0] sm:$0xff]
          %v425 = vld [vmem:[#allocation8 + $0xf8] sm:$0xff]
          %v426 = vld [vmem:[#allocation8 + $0x100] sm:$0xff]
          %v427 = vld [vmem:[#allocation8 + $0x108] sm:$0xff]
          %v428 = vld [vmem:[#allocation8 + $0x110] sm:$0xff]
          %v429 = vld [vmem:[#allocation8 + $0x118] sm:$0xff]
          %v430 = vld [vmem:[#allocation8 + $0x120] sm:$0xff]
          %v431 = vld [vmem:[#allocation8 + $0x128] sm:$0xff]
          %v432 = vld [vmem:[#allocation8 + $0x130] sm:$0xff]
          %v433 = vld [vmem:[#allocation8 + $0x138] sm:$0xff]
          %v434 = vld [vmem:[#allocation8 + $0x140] sm:$0xff]
          %v435 = vld [vmem:[#allocation8 + $0x148] sm:$0xff]
          %v436 = vld [vmem:[#allocation8 + $0x150] sm:$0xff]
          %v437 = vld [vmem:[#allocation8 + $0x158] sm:$0xff]
          %v438 = vld [vmem:[#allocation8 + $0x160] sm:$0xff]
          %v439 = vld [vmem:[#allocation8 + $0x168] sm:$0xff]
          %v440 = vld [vmem:[#allocation8 + $0x170] sm:$0xff]
          %v441 = vld [vmem:[#allocation8 + $0x178] sm:$0xff]
          %v442 = vld [vmem:[#allocation8 + $0x180] sm:$0xff]
          %v443 = vld [vmem:[#allocation8 + $0x188] sm:$0xff]
          %v444 = vld [vmem:[#allocation8 + $0x190] sm:$0xff]
          %v445 = vld [vmem:[#allocation8 + $0x198] sm:$0xff]
          %v446 = vld [vmem:[#allocation8 + $0x1a0] sm:$0xff]
          %v447 = vld [vmem:[#allocation8 + $0x1a8] sm:$0xff]
          %v448 = vld [vmem:[#allocation8 + $0x1b0] sm:$0xff]
          %v449 = vld [vmem:[#allocation8 + $0x1b8] sm:$0xff]
          %v450 = vld [vmem:[#allocation8 + $0x1c0] sm:$0xff]
          %v451 = vld [vmem:[#allocation8 + $0x1c8] sm:$0xff]
          %v452 = vld [vmem:[#allocation8 + $0x1d0] sm:$0xff]
          %v453 = vld [vmem:[#allocation8 + $0x1d8] sm:$0xff]
          %v454 = vld [vmem:[#allocation8 + $0x1e0] sm:$0xff]
          %v455 = vld [vmem:[#allocation8 + $0x1e8] sm:$0xff]
          %v456 = vld [vmem:[#allocation8 + $0x1f0] sm:$0xff]
          %v457 = vld [vmem:[#allocation8 + $0x1f8] sm:$0xff]
          %v458 = vld [vmem:[#allocation6] sm:$0xff]
          %v459 = vld [vmem:[#allocation6 + $0x8] sm:$0xff]
          %v524 = vunpack.c.l.b16 %v394
          %v525 = vunpack.c.h.b16 %v394
          %v526 = vunpack.c.l.b16 %v395
          %v527 = vunpack.c.h.b16 %v395
          %v528 = vunpack.c.l.b16 %v396
          %v529 = vunpack.c.h.b16 %v396
          %v530 = vunpack.c.l.b16 %v397
          %v531 = vunpack.c.h.b16 %v397
          %v532 = vunpack.c.l.b16 %v398
          %v533 = vunpack.c.h.b16 %v398
          %v534 = vunpack.c.l.b16 %v399
          %v535 = vunpack.c.h.b16 %v399
          %v536 = vunpack.c.l.b16 %v400
          %v537 = vunpack.c.h.b16 %v400
          %v538 = vunpack.c.l.b16 %v401
          %v539 = vunpack.c.h.b16 %v401
          %v540 = vunpack.c.l.b16 %v402
          %v541 = vunpack.c.h.b16 %v402
          %v542 = vunpack.c.l.b16 %v403
          %v543 = vunpack.c.h.b16 %v403
          %v544 = vunpack.c.l.b16 %v404
          %v545 = vunpack.c.h.b16 %v404
          %v546 = vunpack.c.l.b16 %v405
          %v547 = vunpack.c.h.b16 %v405
          %v548 = vunpack.c.l.b16 %v406
          %v549 = vunpack.c.h.b16 %v406
          %v550 = vunpack.c.l.b16 %v407
          %v551 = vunpack.c.h.b16 %v407
          %v552 = vunpack.c.l.b16 %v408
          %v553 = vunpack.c.h.b16 %v408
          %v554 = vunpack.c.l.b16 %v409
          %v555 = vunpack.c.h.b16 %v409
          %v556 = vunpack.c.l.b16 %v410
          %v557 = vunpack.c.h.b16 %v410
          %v558 = vunpack.c.l.b16 %v411
          %v559 = vunpack.c.h.b16 %v411
          %v560 = vunpack.c.l.b16 %v412
          %v561 = vunpack.c.h.b16 %v412
          %v562 = vunpack.c.l.b16 %v413
          %v563 = vunpack.c.h.b16 %v413
          %v564 = vunpack.c.l.b16 %v414
          %v565 = vunpack.c.h.b16 %v414
          %v566 = vunpack.c.l.b16 %v415
          %v567 = vunpack.c.h.b16 %v415
          %v568 = vunpack.c.l.b16 %v416
          %v569 = vunpack.c.h.b16 %v416
          %v570 = vunpack.c.l.b16 %v417
          %v571 = vunpack.c.h.b16 %v417
          %v572 = vunpack.c.l.b16 %v418
          %v573 = vunpack.c.h.b16 %v418
          %v574 = vunpack.c.l.b16 %v419
          %v575 = vunpack.c.h.b16 %v419
          %v576 = vunpack.c.l.b16 %v420
          %v577 = vunpack.c.h.b16 %v420
          %v578 = vunpack.c.l.b16 %v421
          %v579 = vunpack.c.h.b16 %v421
          %v580 = vunpack.c.l.b16 %v422
          %v581 = vunpack.c.h.b16 %v422
          %v582 = vunpack.c.l.b16 %v423
          %v583 = vunpack.c.h.b16 %v423
          %v584 = vunpack.c.l.b16 %v424
          %v585 = vunpack.c.h.b16 %v424
          %v586 = vunpack.c.l.b16 %v425
          %v587 = vunpack.c.h.b16 %v425
          %v588 = vunpack.c.l.b16 %v426
          %v589 = vunpack.c.h.b16 %v426
          %v590 = vunpack.c.l.b16 %v427
          %v591 = vunpack.c.h.b16 %v427
          %v592 = vunpack.c.l.b16 %v428
          %v593 = vunpack.c.h.b16 %v428
          %v594 = vunpack.c.l.b16 %v429
          %v595 = vunpack.c.h.b16 %v429
          %v596 = vunpack.c.l.b16 %v430
          %v597 = vunpack.c.h.b16 %v430
          %v598 = vunpack.c.l.b16 %v431
          %v599 = vunpack.c.h.b16 %v431
          %v600 = vunpack.c.l.b16 %v432
          %v601 = vunpack.c.h.b16 %v432
          %v602 = vunpack.c.l.b16 %v433
          %v603 = vunpack.c.h.b16 %v433
          %v604 = vunpack.c.l.b16 %v434
          %v605 = vunpack.c.h.b16 %v434
          %v606 = vunpack.c.l.b16 %v435
          %v607 = vunpack.c.h.b16 %v435
          %v608 = vunpack.c.l.b16 %v436
          %v609 = vunpack.c.h.b16 %v436
          %v610 = vunpack.c.l.b16 %v437
          %v611 = vunpack.c.h.b16 %v437
          %v612 = vunpack.c.l.b16 %v438
          %v613 = vunpack.c.h.b16 %v438
          %v614 = vunpack.c.l.b16 %v439
          %v615 = vunpack.c.h.b16 %v439
          %v616 = vunpack.c.l.b16 %v440
          %v617 = vunpack.c.h.b16 %v440
          %v618 = vunpack.c.l.b16 %v441
          %v619 = vunpack.c.h.b16 %v441
          %v620 = vunpack.c.l.b16 %v442
          %v621 = vunpack.c.h.b16 %v442
          %v622 = vunpack.c.l.b16 %v443
          %v623 = vunpack.c.h.b16 %v443
          %v624 = vunpack.c.l.b16 %v444
          %v625 = vunpack.c.h.b16 %v444
          %v626 = vunpack.c.l.b16 %v445
          %v627 = vunpack.c.h.b16 %v445
          %v628 = vunpack.c.l.b16 %v446
          %v629 = vunpack.c.h.b16 %v446
          %v630 = vunpack.c.l.b16 %v447
          %v631 = vunpack.c.h.b16 %v447
          %v632 = vunpack.c.l.b16 %v448
          %v633 = vunpack.c.h.b16 %v448
          %v634 = vunpack.c.l.b16 %v449
          %v635 = vunpack.c.h.b16 %v449
          %v636 = vunpack.c.l.b16 %v450
          %v637 = vunpack.c.h.b16 %v450
          %v638 = vunpack.c.l.b16 %v451
          %v639 = vunpack.c.h.b16 %v451
          %v640 = vunpack.c.l.b16 %v452
          %v641 = vunpack.c.h.b16 %v452
          %v642 = vunpack.c.l.b16 %v453
          %v643 = vunpack.c.h.b16 %v453
          %v644 = vunpack.c.l.b16 %v454
          %v645 = vunpack.c.h.b16 %v454
          %v646 = vunpack.c.l.b16 %v455
          %v647 = vunpack.c.h.b16 %v455
          %v648 = vunpack.c.l.b16 %v456
          %v649 = vunpack.c.h.b16 %v456
          %v650 = vunpack.c.l.b16 %v457
          %v651 = vunpack.c.h.b16 %v457
          %v652 = vpack.c.b16 %v528, %v524
          %v653 = vpack.c.b16 %v529, %v525
          %v654 = vpack.c.b16 %v530, %v526
          %v655 = vpack.c.b16 %v531, %v527
          %v656 = vpack.c.b16 %v536, %v532
          %v657 = vpack.c.b16 %v537, %v533
          %v658 = vpack.c.b16 %v538, %v534
          %v659 = vpack.c.b16 %v539, %v535
          %v660 = vpack.c.b16 %v544, %v540
          %v661 = vpack.c.b16 %v545, %v541
          %v662 = vpack.c.b16 %v546, %v542
          %v663 = vpack.c.b16 %v547, %v543
          %v664 = vpack.c.b16 %v552, %v548
          %v665 = vpack.c.b16 %v553, %v549
          %v666 = vpack.c.b16 %v554, %v550
          %v667 = vpack.c.b16 %v555, %v551
          %v668 = vpack.c.b16 %v560, %v556
          %v669 = vpack.c.b16 %v561, %v557
          %v670 = vpack.c.b16 %v562, %v558
          %v671 = vpack.c.b16 %v563, %v559
          %v672 = vpack.c.b16 %v568, %v564
          %v673 = vpack.c.b16 %v569, %v565
          %v674 = vpack.c.b16 %v570, %v566
          %v675 = vpack.c.b16 %v571, %v567
          %v676 = vpack.c.b16 %v576, %v572
          %v677 = vpack.c.b16 %v577, %v573
          %v678 = vpack.c.b16 %v578, %v574
          %v679 = vpack.c.b16 %v579, %v575
          %v680 = vpack.c.b16 %v584, %v580
          %v681 = vpack.c.b16 %v585, %v581
          %v682 = vpack.c.b16 %v586, %v582
          %v683 = vpack.c.b16 %v587, %v583
          %v684 = vpack.c.b16 %v592, %v588
          %v685 = vpack.c.b16 %v593, %v589
          %v686 = vpack.c.b16 %v594, %v590
          %v687 = vpack.c.b16 %v595, %v591
          %v688 = vpack.c.b16 %v600, %v596
          %v689 = vpack.c.b16 %v601, %v597
          %v690 = vpack.c.b16 %v602, %v598
          %v691 = vpack.c.b16 %v603, %v599
          %v692 = vpack.c.b16 %v608, %v604
          %v693 = vpack.c.b16 %v609, %v605
          %v694 = vpack.c.b16 %v610, %v606
          %v695 = vpack.c.b16 %v611, %v607
          %v696 = vpack.c.b16 %v616, %v612
          %v697 = vpack.c.b16 %v617, %v613
          %v698 = vpack.c.b16 %v618, %v614
          %v699 = vpack.c.b16 %v619, %v615
          %v700 = vpack.c.b16 %v624, %v620
          %v701 = vpack.c.b16 %v625, %v621
          %v702 = vpack.c.b16 %v626, %v622
          %v703 = vpack.c.b16 %v627, %v623
          %v704 = vpack.c.b16 %v632, %v628
          %v705 = vpack.c.b16 %v633, %v629
          %v706 = vpack.c.b16 %v634, %v630
          %v707 = vpack.c.b16 %v635, %v631
          %v708 = vpack.c.b16 %v640, %v636
          %v709 = vpack.c.b16 %v641, %v637
          %v710 = vpack.c.b16 %v642, %v638
          %v711 = vpack.c.b16 %v643, %v639
          %v712 = vpack.c.b16 %v648, %v644
          %v713 = vpack.c.b16 %v649, %v645
          %v714 = vpack.c.b16 %v650, %v646
          %v715 = vpack.c.b16 %v651, %v647
          %v782 = vcombine.high %v458, %v458
          %v783 = vcombine.high %v459, %v459
          %786 = vmatprep.subr.bf16.mxu0 %v653
          %787 = vmatpush1.bf16.msra.mxu0 %v652
          %788 = vmatprep.subr.bf16.mxu0 %v657
          %789 = vmatpush1.bf16.msra.mxu0 %v656
          %790 = vmatprep.subr.bf16.mxu0 %v661
          %791 = vmatpush1.bf16.msra.mxu0 %v660
          %792 = vmatprep.subr.bf16.mxu0 %v665
          %793 = vmatpush1.bf16.msra.mxu0 %v664
          %794 = vmatprep.subr.bf16.mxu0 %v669
          %795 = vmatpush1.bf16.msra.mxu0 %v668
          %796 = vmatprep.subr.bf16.mxu0 %v673
          %797 = vmatpush1.bf16.msra.mxu0 %v672
          %798 = vmatprep.subr.bf16.mxu0 %v677
          %799 = vmatpush1.bf16.msra.mxu0 %v676
          %800 = vmatprep.subr.bf16.mxu0 %v681
          %801 = vmatpush1.bf16.msra.mxu0 %v680
          %802 = vmatprep.subr.bf16.mxu0 %v685
          %803 = vmatpush1.bf16.msra.mxu0 %v684
          %804 = vmatprep.subr.bf16.mxu0 %v689
          %805 = vmatpush1.bf16.msra.mxu0 %v688
          %806 = vmatprep.subr.bf16.mxu0 %v693
          %807 = vmatpush1.bf16.msra.mxu0 %v692
          %808 = vmatprep.subr.bf16.mxu0 %v697
          %809 = vmatpush1.bf16.msra.mxu0 %v696
          %810 = vmatprep.subr.bf16.mxu0 %v701
          %811 = vmatpush1.bf16.msra.mxu0 %v700
          %812 = vmatprep.subr.bf16.mxu0 %v705
          %813 = vmatpush1.bf16.msra.mxu0 %v704
          %814 = vmatprep.subr.bf16.mxu0 %v709
          %815 = vmatpush1.bf16.msra.mxu0 %v708
          %816 = vmatprep.subr.bf16.mxu0 %v713
          %817 = vmatpush1.bf16.msra.mxu0 %v712
          %818 = vmatprep.mubr.bf16.mxu0 %v393
          %819 = vmatmul.mubr.bf16.gmra.mrb[0].mxu0 %v392
          %v820 = vpop.f32.mrb[0].mxu0
          %v821 = vadd.f32 %v458, %v820
          %v822 = vpop.f32.mrb[0].mxu0
          %v823 = vadd.f32 %v782, %v822
          %v824 = vpop.f32.mrb[0].mxu0
          %v825 = vpop.f32.mrb[0].mxu0
          %826 = vdwg.mxu0
          %827 = vmatprep.subr.bf16.mxu0 %v655
          %828 = vmatpush1.bf16.msra.mxu0 %v654
          %829 = vmatprep.subr.bf16.mxu0 %v659
          %830 = vmatpush1.bf16.msra.mxu0 %v658
          %831 = vmatprep.subr.bf16.mxu0 %v663
          %832 = vmatpush1.bf16.msra.mxu0 %v662
          %833 = vmatprep.subr.bf16.mxu0 %v667
          %834 = vmatpush1.bf16.msra.mxu0 %v666
          %835 = vmatprep.subr.bf16.mxu0 %v671
          %836 = vmatpush1.bf16.msra.mxu0 %v670
          %837 = vmatprep.subr.bf16.mxu0 %v675
          %838 = vmatpush1.bf16.msra.mxu0 %v674
          %839 = vmatprep.subr.bf16.mxu0 %v679
          %840 = vmatpush1.bf16.msra.mxu0 %v678
          %841 = vmatprep.subr.bf16.mxu0 %v683
          %842 = vmatpush1.bf16.msra.mxu0 %v682
          %843 = vmatprep.subr.bf16.mxu0 %v687
          %844 = vmatpush1.bf16.msra.mxu0 %v686
          %845 = vmatprep.subr.bf16.mxu0 %v691
          %846 = vmatpush1.bf16.msra.mxu0 %v690
          %847 = vmatprep.subr.bf16.mxu0 %v695
          %848 = vmatpush1.bf16.msra.mxu0 %v694
          %849 = vmatprep.subr.bf16.mxu0 %v699
          %850 = vmatpush1.bf16.msra.mxu0 %v698
          %851 = vmatprep.subr.bf16.mxu0 %v703
          %852 = vmatpush1.bf16.msra.mxu0 %v702
          %853 = vmatprep.subr.bf16.mxu0 %v707
          %854 = vmatpush1.bf16.msra.mxu0 %v706
          %855 = vmatprep.subr.bf16.mxu0 %v711
          %856 = vmatpush1.bf16.msra.mxu0 %v710
          %857 = vmatprep.subr.bf16.mxu0 %v715
          %858 = vmatpush1.bf16.msra.mxu0 %v714
          %859 = vmatprep.mubr.bf16.mxu0 %v393
          %860 = vmatmul.mubr.bf16.gmra.mrb[0].mxu0 %v392
          %v861 = vpop.f32.mrb[0].mxu0
          %v862 = vadd.f32 %v459, %v861
          %v863 = vpop.f32.mrb[0].mxu0
          %v864 = vadd.f32 %v783, %v863
          %v865 = vpop.f32.mrb[0].mxu0
          %v866 = vpop.f32.mrb[0].mxu0
          %867 = vdwg.mxu0
          %v868 = vld [vmem:[%s3] sm:$0xf]
          %v870 = vlaneseq
          %v871 = vshrl.u32 %v870, 7
          %v872 = vsub.s32 0, %v871
          %v873 = vrot.slane %v868, %v872
          %v874 = vlaneseq
          %v875 = vshrl.u32 %v874, 7
          %v876 = vsub.s32 1, %v875
          %v877 = vrot.slane %v868, %v876
          %v878 = vlaneseq
          %v879 = vshrl.u32 %v878, 7
          %v880 = vsub.s32 2, %v879
          %v881 = vrot.slane %v868, %v880
          %v882 = vlaneseq
          %v883 = vshrl.u32 %v882, 7
          %v884 = vsub.s32 3, %v883
          %v885 = vrot.slane %v868, %v884
          %v890 = vadd.f32 %v821, %v873
          %v891 = vadd.f32 %v823, %v877
          %v892 = vadd.f32 %v862, %v881
          %v893 = vadd.f32 %v864, %v885
          %vm894 = vcmp.ge.f32.partialorder %v890, 0.0
          %vm895 = vcmp.ge.f32.partialorder %v891, 0.0
          %vm896 = vcmp.ge.f32.partialorder %v892, 0.0
          %vm897 = vcmp.ge.f32.partialorder %v893, 0.0
          %v898 = vmul.f32 %v890, 0.2
          %v899 = vmul.f32 %v891, 0.2
          %v900 = vmul.f32 %v892, 0.2
          %v901 = vmul.f32 %v893, 0.2
          %v902 = vsel %vm894, %v890, %v898
          %v903 = vsel %vm895, %v891, %v899
          %v904 = vsel %vm896, %v892, %v900
          %v905 = vsel %vm897, %v893, %v901
          %v910 = vcombine.low %v902, %v903
          %v911 = vcombine.low %v904, %v905
          %914 = vst [vmem:[#allocation2] sm:$0xff] %v910
          %915 = vst [vmem:[#allocation2 + $0x8] sm:$0xff] %v911
        $region76: #{tpu_custom_call.1} parent=51 // pred_fallthru
          _
        %v916 = vld [vmem:[#allocation2] sm:$0xff]
        %v917 = vld [vmem:[#allocation2 + $0x8] sm:$0xff]
        %v920 = vcombine.high %v916, %v916
        %v921 = vcombine.high %v917, %v917
        %v924 = vpack.c.bf16 %v916, %v916
        %v925 = vpack.c.bf16 %v920, %v920
        %v926 = vpack.c.bf16 %v917, %v917
        %v927 = vpack.c.bf16 %v921, %v921
        %v928 = vld [vmem:[%s343] sm:$0xff]
        %v929 = vld [vmem:[%s343 + $0x8] sm:$0xff]
        %v930 = vld [vmem:[%s343 + $0x10] sm:$0xff]
        %v931 = vld [vmem:[%s343 + $0x18] sm:$0xff]
        %v932 = vld [vmem:[%s343 + $0x20] sm:$0xff]
        %v933 = vld [vmem:[%s343 + $0x28] sm:$0xff]
        %v934 = vld [vmem:[%s343 + $0x30] sm:$0xff]
        %v935 = vld [vmem:[%s343 + $0x38] sm:$0xff]
        %v936 = vld [vmem:[%s343 + $0x40] sm:$0xff]
        %v937 = vld [vmem:[%s343 + $0x48] sm:$0xff]
        %v938 = vld [vmem:[%s343 + $0x50] sm:$0xff]
        %v939 = vld [vmem:[%s343 + $0x58] sm:$0xff]
        %v940 = vld [vmem:[%s343 + $0x60] sm:$0xff]
        %v941 = vld [vmem:[%s343 + $0x68] sm:$0xff]
        %v942 = vld [vmem:[%s343 + $0x70] sm:$0xff]
        %v943 = vld [vmem:[%s343 + $0x78] sm:$0xff]
        %v944 = vld [vmem:[%s343 + $0x80] sm:$0xff]
        %v945 = vld [vmem:[%s343 + $0x88] sm:$0xff]
        %v946 = vld [vmem:[%s343 + $0x90] sm:$0xff]
        %v947 = vld [vmem:[%s343 + $0x98] sm:$0xff]
        %v948 = vld [vmem:[%s343 + $0xa0] sm:$0xff]
        %v949 = vld [vmem:[%s343 + $0xa8] sm:$0xff]
        %v950 = vld [vmem:[%s343 + $0xb0] sm:$0xff]
        %v951 = vld [vmem:[%s343 + $0xb8] sm:$0xff]
        %v952 = vld [vmem:[%s343 + $0xc0] sm:$0xff]
        %v953 = vld [vmem:[%s343 + $0xc8] sm:$0xff]
        %v954 = vld [vmem:[%s343 + $0xd0] sm:$0xff]
        %v955 = vld [vmem:[%s343 + $0xd8] sm:$0xff]
        %v956 = vld [vmem:[%s343 + $0xe0] sm:$0xff]
        %v957 = vld [vmem:[%s343 + $0xe8] sm:$0xff]
        %v958 = vld [vmem:[%s343 + $0xf0] sm:$0xff]
        %v959 = vld [vmem:[%s343 + $0xf8] sm:$0xff]
        %v960 = vld [vmem:[%s343 + $0x100] sm:$0xff]
        %v961 = vld [vmem:[%s343 + $0x108] sm:$0xff]
        %v962 = vld [vmem:[%s343 + $0x110] sm:$0xff]
        %v963 = vld [vmem:[%s343 + $0x118] sm:$0xff]
        %v964 = vld [vmem:[%s343 + $0x120] sm:$0xff]
        %v965 = vld [vmem:[%s343 + $0x128] sm:$0xff]
        %v966 = vld [vmem:[%s343 + $0x130] sm:$0xff]
        %v967 = vld [vmem:[%s343 + $0x138] sm:$0xff]
        %v968 = vld [vmem:[%s343 + $0x140] sm:$0xff]
        %v969 = vld [vmem:[%s343 + $0x148] sm:$0xff]
        %v970 = vld [vmem:[%s343 + $0x150] sm:$0xff]
        %v971 = vld [vmem:[%s343 + $0x158] sm:$0xff]
        %v972 = vld [vmem:[%s343 + $0x160] sm:$0xff]
        %v973 = vld [vmem:[%s343 + $0x168] sm:$0xff]
        %v974 = vld [vmem:[%s343 + $0x170] sm:$0xff]
        %v975 = vld [vmem:[%s343 + $0x178] sm:$0xff]
        %v976 = vld [vmem:[%s343 + $0x180] sm:$0xff]
        %v977 = vld [vmem:[%s343 + $0x188] sm:$0xff]
        %v978 = vld [vmem:[%s343 + $0x190] sm:$0xff]
        %v979 = vld [vmem:[%s343 + $0x198] sm:$0xff]
        %v980 = vld [vmem:[%s343 + $0x1a0] sm:$0xff]
        %v981 = vld [vmem:[%s343 + $0x1a8] sm:$0xff]
        %v982 = vld [vmem:[%s343 + $0x1b0] sm:$0xff]
        %v983 = vld [vmem:[%s343 + $0x1b8] sm:$0xff]
        %v984 = vld [vmem:[%s343 + $0x1c0] sm:$0xff]
        %v985 = vld [vmem:[%s343 + $0x1c8] sm:$0xff]
        %v986 = vld [vmem:[%s343 + $0x1d0] sm:$0xff]
        %v987 = vld [vmem:[%s343 + $0x1d8] sm:$0xff]
        %v988 = vld [vmem:[%s343 + $0x1e0] sm:$0xff]
        %v989 = vld [vmem:[%s343 + $0x1e8] sm:$0xff]
        %v990 = vld [vmem:[%s343 + $0x1f0] sm:$0xff]
        %v991 = vld [vmem:[%s343 + $0x1f8] sm:$0xff]
        %v992 = vld [vmem:[%s343 + $0x200] sm:$0xff]
        %v993 = vld [vmem:[%s343 + $0x208] sm:$0xff]
        %v994 = vld [vmem:[%s343 + $0x210] sm:$0xff]
        %v995 = vld [vmem:[%s343 + $0x218] sm:$0xff]
        %v996 = vld [vmem:[%s343 + $0x220] sm:$0xff]
        %v997 = vld [vmem:[%s343 + $0x228] sm:$0xff]
        %v998 = vld [vmem:[%s343 + $0x230] sm:$0xff]
        %v999 = vld [vmem:[%s343 + $0x238] sm:$0xff]
        %v1000 = vld [vmem:[%s343 + $0x240] sm:$0xff]
        %v1001 = vld [vmem:[%s343 + $0x248] sm:$0xff]
        %v1002 = vld [vmem:[%s343 + $0x250] sm:$0xff]
        %v1003 = vld [vmem:[%s343 + $0x258] sm:$0xff]
        %v1004 = vld [vmem:[%s343 + $0x260] sm:$0xff]
        %v1005 = vld [vmem:[%s343 + $0x268] sm:$0xff]
        %v1006 = vld [vmem:[%s343 + $0x270] sm:$0xff]
        %v1007 = vld [vmem:[%s343 + $0x278] sm:$0xff]
        %v1008 = vld [vmem:[%s343 + $0x280] sm:$0xff]
        %v1009 = vld [vmem:[%s343 + $0x288] sm:$0xff]
        %v1010 = vld [vmem:[%s343 + $0x290] sm:$0xff]
        %v1011 = vld [vmem:[%s343 + $0x298] sm:$0xff]
        %v1012 = vld [vmem:[%s343 + $0x2a0] sm:$0xff]
        %v1013 = vld [vmem:[%s343 + $0x2a8] sm:$0xff]
        %v1014 = vld [vmem:[%s343 + $0x2b0] sm:$0xff]
        %v1015 = vld [vmem:[%s343 + $0x2b8] sm:$0xff]
        %v1016 = vld [vmem:[%s343 + $0x2c0] sm:$0xff]
        %v1017 = vld [vmem:[%s343 + $0x2c8] sm:$0xff]
        %v1018 = vld [vmem:[%s343 + $0x2d0] sm:$0xff]
        %v1019 = vld [vmem:[%s343 + $0x2d8] sm:$0xff]
        %v1020 = vld [vmem:[%s343 + $0x2e0] sm:$0xff]
        %v1021 = vld [vmem:[%s343 + $0x2e8] sm:$0xff]
        %v1022 = vld [vmem:[%s343 + $0x2f0] sm:$0xff]
        %v1023 = vld [vmem:[%s343 + $0x2f8] sm:$0xff]
        %v1024 = vld [vmem:[%s343 + $0x300] sm:$0xff]
        %v1025 = vld [vmem:[%s343 + $0x308] sm:$0xff]
        %v1026 = vld [vmem:[%s343 + $0x310] sm:$0xff]
        %v1027 = vld [vmem:[%s343 + $0x318] sm:$0xff]
        %v1028 = vld [vmem:[%s343 + $0x320] sm:$0xff]
        %v1029 = vld [vmem:[%s343 + $0x328] sm:$0xff]
        %v1030 = vld [vmem:[%s343 + $0x330] sm:$0xff]
        %v1031 = vld [vmem:[%s343 + $0x338] sm:$0xff]
        %v1032 = vld [vmem:[%s343 + $0x340] sm:$0xff]
        %v1033 = vld [vmem:[%s343 + $0x348] sm:$0xff]
        %v1034 = vld [vmem:[%s343 + $0x350] sm:$0xff]
        %v1035 = vld [vmem:[%s343 + $0x358] sm:$0xff]
        %v1036 = vld [vmem:[%s343 + $0x360] sm:$0xff]
        %v1037 = vld [vmem:[%s343 + $0x368] sm:$0xff]
        %v1038 = vld [vmem:[%s343 + $0x370] sm:$0xff]
        %v1039 = vld [vmem:[%s343 + $0x378] sm:$0xff]
        %v1040 = vld [vmem:[%s343 + $0x380] sm:$0xff]
        %v1041 = vld [vmem:[%s343 + $0x388] sm:$0xff]
        %v1042 = vld [vmem:[%s343 + $0x390] sm:$0xff]
        %v1043 = vld [vmem:[%s343 + $0x398] sm:$0xff]
        %v1044 = vld [vmem:[%s343 + $0x3a0] sm:$0xff]
        %v1045 = vld [vmem:[%s343 + $0x3a8] sm:$0xff]
        %v1046 = vld [vmem:[%s343 + $0x3b0] sm:$0xff]
        %v1047 = vld [vmem:[%s343 + $0x3b8] sm:$0xff]
        %v1048 = vld [vmem:[%s343 + $0x3c0] sm:$0xff]
        %v1049 = vld [vmem:[%s343 + $0x3c8] sm:$0xff]
        %v1050 = vld [vmem:[%s343 + $0x3d0] sm:$0xff]
        %v1051 = vld [vmem:[%s343 + $0x3d8] sm:$0xff]
        %v1052 = vld [vmem:[%s343 + $0x3e0] sm:$0xff]
        %v1053 = vld [vmem:[%s343 + $0x3e8] sm:$0xff]
        %v1054 = vld [vmem:[%s343 + $0x3f0] sm:$0xff]
        %v1055 = vld [vmem:[%s343 + $0x3f8] sm:$0xff]
        %v1056 = vld [vmem:[%s382] sm:$0xf]
        %v1058 = vlaneseq
        %v1059 = vshrl.u32 %v1058, 7
        %v1060 = vsub.s32 0, %v1059
        %v1061 = vrot.slane %v1056, %v1060
        %v1062 = vlaneseq
        %v1063 = vshrl.u32 %v1062, 7
        %v1064 = vsub.s32 1, %v1063
        %v1065 = vrot.slane %v1056, %v1064
        %v1066 = vlaneseq
        %v1067 = vshrl.u32 %v1066, 7
        %v1068 = vsub.s32 2, %v1067
        %v1069 = vrot.slane %v1056, %v1068
        %v1070 = vlaneseq
        %v1071 = vshrl.u32 %v1070, 7
        %v1072 = vsub.s32 3, %v1071
        %v1073 = vrot.slane %v1056, %v1072
        %v1206 = vunpack.c.l.b16 %v928
        %v1207 = vunpack.c.h.b16 %v928
        %v1208 = vunpack.c.l.b16 %v929
        %v1209 = vunpack.c.h.b16 %v929
        %v1210 = vunpack.c.l.b16 %v930
        %v1211 = vunpack.c.h.b16 %v930
        %v1212 = vunpack.c.l.b16 %v931
        %v1213 = vunpack.c.h.b16 %v931
        %v1214 = vunpack.c.l.b16 %v932
        %v1215 = vunpack.c.h.b16 %v932
        %v1216 = vunpack.c.l.b16 %v933
        %v1217 = vunpack.c.h.b16 %v933
        %v1218 = vunpack.c.l.b16 %v934
        %v1219 = vunpack.c.h.b16 %v934
        %v1220 = vunpack.c.l.b16 %v935
        %v1221 = vunpack.c.h.b16 %v935
        %v1222 = vunpack.c.l.b16 %v936
        %v1223 = vunpack.c.h.b16 %v936
        %v1224 = vunpack.c.l.b16 %v937
        %v1225 = vunpack.c.h.b16 %v937
        %v1226 = vunpack.c.l.b16 %v938
        %v1227 = vunpack.c.h.b16 %v938
        %v1228 = vunpack.c.l.b16 %v939
        %v1229 = vunpack.c.h.b16 %v939
        %v1230 = vunpack.c.l.b16 %v940
        %v1231 = vunpack.c.h.b16 %v940
        %v1232 = vunpack.c.l.b16 %v941
        %v1233 = vunpack.c.h.b16 %v941
        %v1234 = vunpack.c.l.b16 %v942
        %v1235 = vunpack.c.h.b16 %v942
        %v1236 = vunpack.c.l.b16 %v943
        %v1237 = vunpack.c.h.b16 %v943
        %v1238 = vunpack.c.l.b16 %v944
        %v1239 = vunpack.c.h.b16 %v944
        %v1240 = vunpack.c.l.b16 %v945
        %v1241 = vunpack.c.h.b16 %v945
        %v1242 = vunpack.c.l.b16 %v946
        %v1243 = vunpack.c.h.b16 %v946
        %v1244 = vunpack.c.l.b16 %v947
        %v1245 = vunpack.c.h.b16 %v947
        %v1246 = vunpack.c.l.b16 %v948
        %v1247 = vunpack.c.h.b16 %v948
        %v1248 = vunpack.c.l.b16 %v949
        %v1249 = vunpack.c.h.b16 %v949
        %v1250 = vunpack.c.l.b16 %v950
        %v1251 = vunpack.c.h.b16 %v950
        %v1252 = vunpack.c.l.b16 %v951
        %v1253 = vunpack.c.h.b16 %v951
        %v1254 = vunpack.c.l.b16 %v952
        %v1255 = vunpack.c.h.b16 %v952
        %v1256 = vunpack.c.l.b16 %v953
        %v1257 = vunpack.c.h.b16 %v953
        %v1258 = vunpack.c.l.b16 %v954
        %v1259 = vunpack.c.h.b16 %v954
        %v1260 = vunpack.c.l.b16 %v955
        %v1261 = vunpack.c.h.b16 %v955
        %v1262 = vunpack.c.l.b16 %v956
        %v1263 = vunpack.c.h.b16 %v956
        %v1264 = vunpack.c.l.b16 %v957
        %v1265 = vunpack.c.h.b16 %v957
        %v1266 = vunpack.c.l.b16 %v958
        %v1267 = vunpack.c.h.b16 %v958
        %v1268 = vunpack.c.l.b16 %v959
        %v1269 = vunpack.c.h.b16 %v959
        %v1270 = vunpack.c.l.b16 %v960
        %v1271 = vunpack.c.h.b16 %v960
        %v1272 = vunpack.c.l.b16 %v961
        %v1273 = vunpack.c.h.b16 %v961
        %v1274 = vunpack.c.l.b16 %v962
        %v1275 = vunpack.c.h.b16 %v962
        %v1276 = vunpack.c.l.b16 %v963
        %v1277 = vunpack.c.h.b16 %v963
        %v1278 = vunpack.c.l.b16 %v964
        %v1279 = vunpack.c.h.b16 %v964
        %v1280 = vunpack.c.l.b16 %v965
        %v1281 = vunpack.c.h.b16 %v965
        %v1282 = vunpack.c.l.b16 %v966
        %v1283 = vunpack.c.h.b16 %v966
        %v1284 = vunpack.c.l.b16 %v967
        %v1285 = vunpack.c.h.b16 %v967
        %v1286 = vunpack.c.l.b16 %v968
        %v1287 = vunpack.c.h.b16 %v968
        %v1288 = vunpack.c.l.b16 %v969
        %v1289 = vunpack.c.h.b16 %v969
        %v1290 = vunpack.c.l.b16 %v970
        %v1291 = vunpack.c.h.b16 %v970
        %v1292 = vunpack.c.l.b16 %v971
        %v1293 = vunpack.c.h.b16 %v971
        %v1294 = vunpack.c.l.b16 %v972
        %v1295 = vunpack.c.h.b16 %v972
        %v1296 = vunpack.c.l.b16 %v973
        %v1297 = vunpack.c.h.b16 %v973
        %v1298 = vunpack.c.l.b16 %v974
        %v1299 = vunpack.c.h.b16 %v974
        %v1300 = vunpack.c.l.b16 %v975
        %v1301 = vunpack.c.h.b16 %v975
        %v1302 = vunpack.c.l.b16 %v976
        %v1303 = vunpack.c.h.b16 %v976
        %v1304 = vunpack.c.l.b16 %v977
        %v1305 = vunpack.c.h.b16 %v977
        %v1306 = vunpack.c.l.b16 %v978
        %v1307 = vunpack.c.h.b16 %v978
        %v1308 = vunpack.c.l.b16 %v979
        %v1309 = vunpack.c.h.b16 %v979
        %v1310 = vunpack.c.l.b16 %v980
        %v1311 = vunpack.c.h.b16 %v980
        %v1312 = vunpack.c.l.b16 %v981
        %v1313 = vunpack.c.h.b16 %v981
        %v1314 = vunpack.c.l.b16 %v982
        %v1315 = vunpack.c.h.b16 %v982
        %v1316 = vunpack.c.l.b16 %v983
        %v1317 = vunpack.c.h.b16 %v983
        %v1318 = vunpack.c.l.b16 %v984
        %v1319 = vunpack.c.h.b16 %v984
        %v1320 = vunpack.c.l.b16 %v985
        %v1321 = vunpack.c.h.b16 %v985
        %v1322 = vunpack.c.l.b16 %v986
        %v1323 = vunpack.c.h.b16 %v986
        %v1324 = vunpack.c.l.b16 %v987
        %v1325 = vunpack.c.h.b16 %v987
        %v1326 = vunpack.c.l.b16 %v988
        %v1327 = vunpack.c.h.b16 %v988
        %v1328 = vunpack.c.l.b16 %v989
        %v1329 = vunpack.c.h.b16 %v989
        %v1330 = vunpack.c.l.b16 %v990
        %v1331 = vunpack.c.h.b16 %v990
        %v1332 = vunpack.c.l.b16 %v991
        %v1333 = vunpack.c.h.b16 %v991
        %v1334 = vunpack.c.l.b16 %v992
        %v1335 = vunpack.c.h.b16 %v992
        %v1336 = vunpack.c.l.b16 %v993
        %v1337 = vunpack.c.h.b16 %v993
        %v1338 = vunpack.c.l.b16 %v994
        %v1339 = vunpack.c.h.b16 %v994
        %v1340 = vunpack.c.l.b16 %v995
        %v1341 = vunpack.c.h.b16 %v995
        %v1342 = vunpack.c.l.b16 %v996
        %v1343 = vunpack.c.h.b16 %v996
        %v1344 = vunpack.c.l.b16 %v997
        %v1345 = vunpack.c.h.b16 %v997
        %v1346 = vunpack.c.l.b16 %v998
        %v1347 = vunpack.c.h.b16 %v998
        %v1348 = vunpack.c.l.b16 %v999
        %v1349 = vunpack.c.h.b16 %v999
        %v1350 = vunpack.c.l.b16 %v1000
        %v1351 = vunpack.c.h.b16 %v1000
        %v1352 = vunpack.c.l.b16 %v1001
        %v1353 = vunpack.c.h.b16 %v1001
        %v1354 = vunpack.c.l.b16 %v1002
        %v1355 = vunpack.c.h.b16 %v1002
        %v1356 = vunpack.c.l.b16 %v1003
        %v1357 = vunpack.c.h.b16 %v1003
        %v1358 = vunpack.c.l.b16 %v1004
        %v1359 = vunpack.c.h.b16 %v1004
        %v1360 = vunpack.c.l.b16 %v1005
        %v1361 = vunpack.c.h.b16 %v1005
        %v1362 = vunpack.c.l.b16 %v1006
        %v1363 = vunpack.c.h.b16 %v1006
        %v1364 = vunpack.c.l.b16 %v1007
        %v1365 = vunpack.c.h.b16 %v1007
        %v1366 = vunpack.c.l.b16 %v1008
        %v1367 = vunpack.c.h.b16 %v1008
        %v1368 = vunpack.c.l.b16 %v1009
        %v1369 = vunpack.c.h.b16 %v1009
        %v1370 = vunpack.c.l.b16 %v1010
        %v1371 = vunpack.c.h.b16 %v1010
        %v1372 = vunpack.c.l.b16 %v1011
        %v1373 = vunpack.c.h.b16 %v1011
        %v1374 = vunpack.c.l.b16 %v1012
        %v1375 = vunpack.c.h.b16 %v1012
        %v1376 = vunpack.c.l.b16 %v1013
        %v1377 = vunpack.c.h.b16 %v1013
        %v1378 = vunpack.c.l.b16 %v1014
        %v1379 = vunpack.c.h.b16 %v1014
        %v1380 = vunpack.c.l.b16 %v1015
        %v1381 = vunpack.c.h.b16 %v1015
        %v1382 = vunpack.c.l.b16 %v1016
        %v1383 = vunpack.c.h.b16 %v1016
        %v1384 = vunpack.c.l.b16 %v1017
        %v1385 = vunpack.c.h.b16 %v1017
        %v1386 = vunpack.c.l.b16 %v1018
        %v1387 = vunpack.c.h.b16 %v1018
        %v1388 = vunpack.c.l.b16 %v1019
        %v1389 = vunpack.c.h.b16 %v1019
        %v1390 = vunpack.c.l.b16 %v1020
        %v1391 = vunpack.c.h.b16 %v1020
        %v1392 = vunpack.c.l.b16 %v1021
        %v1393 = vunpack.c.h.b16 %v1021
        %v1394 = vunpack.c.l.b16 %v1022
        %v1395 = vunpack.c.h.b16 %v1022
        %v1396 = vunpack.c.l.b16 %v1023
        %v1397 = vunpack.c.h.b16 %v1023
        %v1398 = vunpack.c.l.b16 %v1024
        %v1399 = vunpack.c.h.b16 %v1024
        %v1400 = vunpack.c.l.b16 %v1025
        %v1401 = vunpack.c.h.b16 %v1025
        %v1402 = vunpack.c.l.b16 %v1026
        %v1403 = vunpack.c.h.b16 %v1026
        %v1404 = vunpack.c.l.b16 %v1027
        %v1405 = vunpack.c.h.b16 %v1027
        %v1406 = vunpack.c.l.b16 %v1028
        %v1407 = vunpack.c.h.b16 %v1028
        %v1408 = vunpack.c.l.b16 %v1029
        %v1409 = vunpack.c.h.b16 %v1029
        %v1410 = vunpack.c.l.b16 %v1030
        %v1411 = vunpack.c.h.b16 %v1030
        %v1412 = vunpack.c.l.b16 %v1031
        %v1413 = vunpack.c.h.b16 %v1031
        %v1414 = vunpack.c.l.b16 %v1032
        %v1415 = vunpack.c.h.b16 %v1032
        %v1416 = vunpack.c.l.b16 %v1033
        %v1417 = vunpack.c.h.b16 %v1033
        %v1418 = vunpack.c.l.b16 %v1034
        %v1419 = vunpack.c.h.b16 %v1034
        %v1420 = vunpack.c.l.b16 %v1035
        %v1421 = vunpack.c.h.b16 %v1035
        %v1422 = vunpack.c.l.b16 %v1036
        %v1423 = vunpack.c.h.b16 %v1036
        %v1424 = vunpack.c.l.b16 %v1037
        %v1425 = vunpack.c.h.b16 %v1037
        %v1426 = vunpack.c.l.b16 %v1038
        %v1427 = vunpack.c.h.b16 %v1038
        %v1428 = vunpack.c.l.b16 %v1039
        %v1429 = vunpack.c.h.b16 %v1039
        %v1430 = vunpack.c.l.b16 %v1040
        %v1431 = vunpack.c.h.b16 %v1040
        %v1432 = vunpack.c.l.b16 %v1041
        %v1433 = vunpack.c.h.b16 %v1041
        %v1434 = vunpack.c.l.b16 %v1042
        %v1435 = vunpack.c.h.b16 %v1042
        %v1436 = vunpack.c.l.b16 %v1043
        %v1437 = vunpack.c.h.b16 %v1043
        %v1438 = vunpack.c.l.b16 %v1044
        %v1439 = vunpack.c.h.b16 %v1044
        %v1440 = vunpack.c.l.b16 %v1045
        %v1441 = vunpack.c.h.b16 %v1045
        %v1442 = vunpack.c.l.b16 %v1046
        %v1443 = vunpack.c.h.b16 %v1046
        %v1444 = vunpack.c.l.b16 %v1047
        %v1445 = vunpack.c.h.b16 %v1047
        %v1446 = vunpack.c.l.b16 %v1048
        %v1447 = vunpack.c.h.b16 %v1048
        %v1448 = vunpack.c.l.b16 %v1049
        %v1449 = vunpack.c.h.b16 %v1049
        %v1450 = vunpack.c.l.b16 %v1050
        %v1451 = vunpack.c.h.b16 %v1050
        %v1452 = vunpack.c.l.b16 %v1051
        %v1453 = vunpack.c.h.b16 %v1051
        %v1454 = vunpack.c.l.b16 %v1052
        %v1455 = vunpack.c.h.b16 %v1052
        %v1456 = vunpack.c.l.b16 %v1053
        %v1457 = vunpack.c.h.b16 %v1053
        %v1458 = vunpack.c.l.b16 %v1054
        %v1459 = vunpack.c.h.b16 %v1054
        %v1460 = vunpack.c.l.b16 %v1055
        %v1461 = vunpack.c.h.b16 %v1055
        %v1462 = vpack.c.b16 %v1210, %v1206
        %v1463 = vpack.c.b16 %v1211, %v1207
        %v1464 = vpack.c.b16 %v1212, %v1208
        %v1465 = vpack.c.b16 %v1213, %v1209
        %v1466 = vpack.c.b16 %v1218, %v1214
        %v1467 = vpack.c.b16 %v1219, %v1215
        %v1468 = vpack.c.b16 %v1220, %v1216
        %v1469 = vpack.c.b16 %v1221, %v1217
        %v1470 = vpack.c.b16 %v1226, %v1222
        %v1471 = vpack.c.b16 %v1227, %v1223
        %v1472 = vpack.c.b16 %v1228, %v1224
        %v1473 = vpack.c.b16 %v1229, %v1225
        %v1474 = vpack.c.b16 %v1234, %v1230
        %v1475 = vpack.c.b16 %v1235, %v1231
        %v1476 = vpack.c.b16 %v1236, %v1232
        %v1477 = vpack.c.b16 %v1237, %v1233
        %v1478 = vpack.c.b16 %v1242, %v1238
        %v1479 = vpack.c.b16 %v1243, %v1239
        %v1480 = vpack.c.b16 %v1244, %v1240
        %v1481 = vpack.c.b16 %v1245, %v1241
        %v1482 = vpack.c.b16 %v1250, %v1246
        %v1483 = vpack.c.b16 %v1251, %v1247
        %v1484 = vpack.c.b16 %v1252, %v1248
        %v1485 = vpack.c.b16 %v1253, %v1249
        %v1486 = vpack.c.b16 %v1258, %v1254
        %v1487 = vpack.c.b16 %v1259, %v1255
        %v1488 = vpack.c.b16 %v1260, %v1256
        %v1489 = vpack.c.b16 %v1261, %v1257
        %v1490 = vpack.c.b16 %v1266, %v1262
        %v1491 = vpack.c.b16 %v1267, %v1263
        %v1492 = vpack.c.b16 %v1268, %v1264
        %v1493 = vpack.c.b16 %v1269, %v1265
        %v1494 = vpack.c.b16 %v1274, %v1270
        %v1495 = vpack.c.b16 %v1275, %v1271
        %v1496 = vpack.c.b16 %v1276, %v1272
        %v1497 = vpack.c.b16 %v1277, %v1273
        %v1498 = vpack.c.b16 %v1282, %v1278
        %v1499 = vpack.c.b16 %v1283, %v1279
        %v1500 = vpack.c.b16 %v1284, %v1280
        %v1501 = vpack.c.b16 %v1285, %v1281
        %v1502 = vpack.c.b16 %v1290, %v1286
        %v1503 = vpack.c.b16 %v1291, %v1287
        %v1504 = vpack.c.b16 %v1292, %v1288
        %v1505 = vpack.c.b16 %v1293, %v1289
        %v1506 = vpack.c.b16 %v1298, %v1294
        %v1507 = vpack.c.b16 %v1299, %v1295
        %v1508 = vpack.c.b16 %v1300, %v1296
        %v1509 = vpack.c.b16 %v1301, %v1297
        %v1510 = vpack.c.b16 %v1306, %v1302
        %v1511 = vpack.c.b16 %v1307, %v1303
        %v1512 = vpack.c.b16 %v1308, %v1304
        %v1513 = vpack.c.b16 %v1309, %v1305
        %v1514 = vpack.c.b16 %v1314, %v1310
        %v1515 = vpack.c.b16 %v1315, %v1311
        %v1516 = vpack.c.b16 %v1316, %v1312
        %v1517 = vpack.c.b16 %v1317, %v1313
        %v1518 = vpack.c.b16 %v1322, %v1318
        %v1519 = vpack.c.b16 %v1323, %v1319
        %v1520 = vpack.c.b16 %v1324, %v1320
        %v1521 = vpack.c.b16 %v1325, %v1321
        %v1522 = vpack.c.b16 %v1330, %v1326
        %v1523 = vpack.c.b16 %v1331, %v1327
        %v1524 = vpack.c.b16 %v1332, %v1328
        %v1525 = vpack.c.b16 %v1333, %v1329
        %v1526 = vpack.c.b16 %v1338, %v1334
        %v1527 = vpack.c.b16 %v1339, %v1335
        %v1528 = vpack.c.b16 %v1340, %v1336
        %v1529 = vpack.c.b16 %v1341, %v1337
        %v1530 = vpack.c.b16 %v1346, %v1342
        %v1531 = vpack.c.b16 %v1347, %v1343
        %v1532 = vpack.c.b16 %v1348, %v1344
        %v1533 = vpack.c.b16 %v1349, %v1345
        %v1534 = vpack.c.b16 %v1354, %v1350
        %v1535 = vpack.c.b16 %v1355, %v1351
        %v1536 = vpack.c.b16 %v1356, %v1352
        %v1537 = vpack.c.b16 %v1357, %v1353
        %v1538 = vpack.c.b16 %v1362, %v1358
        %v1539 = vpack.c.b16 %v1363, %v1359
        %v1540 = vpack.c.b16 %v1364, %v1360
        %v1541 = vpack.c.b16 %v1365, %v1361
        %v1542 = vpack.c.b16 %v1370, %v1366
        %v1543 = vpack.c.b16 %v1371, %v1367
        %v1544 = vpack.c.b16 %v1372, %v1368
        %v1545 = vpack.c.b16 %v1373, %v1369
        %v1546 = vpack.c.b16 %v1378, %v1374
        %v1547 = vpack.c.b16 %v1379, %v1375
        %v1548 = vpack.c.b16 %v1380, %v1376
        %v1549 = vpack.c.b16 %v1381, %v1377
        %v1550 = vpack.c.b16 %v1386, %v1382
        %v1551 = vpack.c.b16 %v1387, %v1383
        %v1552 = vpack.c.b16 %v1388, %v1384
        %v1553 = vpack.c.b16 %v1389, %v1385
        %v1554 = vpack.c.b16 %v1394, %v1390
        %v1555 = vpack.c.b16 %v1395, %v1391
        %v1556 = vpack.c.b16 %v1396, %v1392
        %v1557 = vpack.c.b16 %v1397, %v1393
        %v1558 = vpack.c.b16 %v1402, %v1398
        %v1559 = vpack.c.b16 %v1403, %v1399
        %v1560 = vpack.c.b16 %v1404, %v1400
        %v1561 = vpack.c.b16 %v1405, %v1401
        %v1562 = vpack.c.b16 %v1410, %v1406
        %v1563 = vpack.c.b16 %v1411, %v1407
        %v1564 = vpack.c.b16 %v1412, %v1408
        %v1565 = vpack.c.b16 %v1413, %v1409
        %v1566 = vpack.c.b16 %v1418, %v1414
        %v1567 = vpack.c.b16 %v1419, %v1415
        %v1568 = vpack.c.b16 %v1420, %v1416
        %v1569 = vpack.c.b16 %v1421, %v1417
        %v1570 = vpack.c.b16 %v1426, %v1422
        %v1571 = vpack.c.b16 %v1427, %v1423
        %v1572 = vpack.c.b16 %v1428, %v1424
        %v1573 = vpack.c.b16 %v1429, %v1425
        %v1574 = vpack.c.b16 %v1434, %v1430
        %v1575 = vpack.c.b16 %v1435, %v1431
        %v1576 = vpack.c.b16 %v1436, %v1432
        %v1577 = vpack.c.b16 %v1437, %v1433
        %v1578 = vpack.c.b16 %v1442, %v1438
        %v1579 = vpack.c.b16 %v1443, %v1439
        %v1580 = vpack.c.b16 %v1444, %v1440
        %v1581 = vpack.c.b16 %v1445, %v1441
        %v1582 = vpack.c.b16 %v1450, %v1446
        %v1583 = vpack.c.b16 %v1451, %v1447
        %v1584 = vpack.c.b16 %v1452, %v1448
        %v1585 = vpack.c.b16 %v1453, %v1449
        %v1586 = vpack.c.b16 %v1458, %v1454
        %v1587 = vpack.c.b16 %v1459, %v1455
        %v1588 = vpack.c.b16 %v1460, %v1456
        %v1589 = vpack.c.b16 %v1461, %v1457
        %1718 = vmatprep.subr.bf16.mxu0 %v1463
        %1719 = vmatpush1.bf16.msra.mxu0 %v1462
        %1720 = vmatprep.subr.bf16.mxu0 %v1467
        %1721 = vmatpush1.bf16.msra.mxu0 %v1466
        %1722 = vmatprep.subr.bf16.mxu0 %v1471
        %1723 = vmatpush1.bf16.msra.mxu0 %v1470
        %1724 = vmatprep.subr.bf16.mxu0 %v1475
        %1725 = vmatpush1.bf16.msra.mxu0 %v1474
        %1726 = vmatprep.subr.bf16.mxu0 %v1479
        %1727 = vmatpush1.bf16.msra.mxu0 %v1478
        %1728 = vmatprep.subr.bf16.mxu0 %v1483
        %1729 = vmatpush1.bf16.msra.mxu0 %v1482
        %1730 = vmatprep.subr.bf16.mxu0 %v1487
        %1731 = vmatpush1.bf16.msra.mxu0 %v1486
        %1732 = vmatprep.subr.bf16.mxu0 %v1491
        %1733 = vmatpush1.bf16.msra.mxu0 %v1490
        %1734 = vmatprep.subr.bf16.mxu0 %v1495
        %1735 = vmatpush1.bf16.msra.mxu0 %v1494
        %1736 = vmatprep.subr.bf16.mxu0 %v1499
        %1737 = vmatpush1.bf16.msra.mxu0 %v1498
        %1738 = vmatprep.subr.bf16.mxu0 %v1503
        %1739 = vmatpush1.bf16.msra.mxu0 %v1502
        %1740 = vmatprep.subr.bf16.mxu0 %v1507
        %1741 = vmatpush1.bf16.msra.mxu0 %v1506
        %1742 = vmatprep.subr.bf16.mxu0 %v1511
        %1743 = vmatpush1.bf16.msra.mxu0 %v1510
        %1744 = vmatprep.subr.bf16.mxu0 %v1515
        %1745 = vmatpush1.bf16.msra.mxu0 %v1514
        %1746 = vmatprep.subr.bf16.mxu0 %v1519
        %1747 = vmatpush1.bf16.msra.mxu0 %v1518
        %1748 = vmatprep.subr.bf16.mxu0 %v1523
        %1749 = vmatpush1.bf16.msra.mxu0 %v1522
        %1750 = vmatprep.mubr.bf16.mxu0 %v925
        %1751 = vmatmul.mubr.bf16.gmra.mrb[0].mxu0 %v924
        %v1752 = vpop.f32.mrb[0].mxu0
        %v1753 = vadd.f32 %v1061, %v1752
        %v1754 = vpop.f32.mrb[0].mxu0
        %v1755 = vadd.f32 %v1065, %v1754
        %v1756 = vpop.f32.mrb[0].mxu0
        %v1757 = vpop.f32.mrb[0].mxu0
        %1758 = vdwg.mxu0
        %1759 = vmatprep.subr.bf16.mxu0 %v1527
        %1760 = vmatpush1.bf16.msra.mxu0 %v1526
        %1761 = vmatprep.subr.bf16.mxu0 %v1531
        %1762 = vmatpush1.bf16.msra.mxu0 %v1530
        %1763 = vmatprep.subr.bf16.mxu0 %v1535
        %1764 = vmatpush1.bf16.msra.mxu0 %v1534
        %1765 = vmatprep.subr.bf16.mxu0 %v1539
        %1766 = vmatpush1.bf16.msra.mxu0 %v1538
        %1767 = vmatprep.subr.bf16.mxu0 %v1543
        %1768 = vmatpush1.bf16.msra.mxu0 %v1542
        %1769 = vmatprep.subr.bf16.mxu0 %v1547
        %1770 = vmatpush1.bf16.msra.mxu0 %v1546
        %1771 = vmatprep.subr.bf16.mxu0 %v1551
        %1772 = vmatpush1.bf16.msra.mxu0 %v1550
        %1773 = vmatprep.subr.bf16.mxu0 %v1555
        %1774 = vmatpush1.bf16.msra.mxu0 %v1554
        %1775 = vmatprep.subr.bf16.mxu0 %v1559
        %1776 = vmatpush1.bf16.msra.mxu0 %v1558
        %1777 = vmatprep.subr.bf16.mxu0 %v1563
        %1778 = vmatpush1.bf16.msra.mxu0 %v1562
        %1779 = vmatprep.subr.bf16.mxu0 %v1567
        %1780 = vmatpush1.bf16.msra.mxu0 %v1566
        %1781 = vmatprep.subr.bf16.mxu0 %v1571
        %1782 = vmatpush1.bf16.msra.mxu0 %v1570
        %1783 = vmatprep.subr.bf16.mxu0 %v1575
        %1784 = vmatpush1.bf16.msra.mxu0 %v1574
        %1785 = vmatprep.subr.bf16.mxu0 %v1579
        %1786 = vmatpush1.bf16.msra.mxu0 %v1578
        %1787 = vmatprep.subr.bf16.mxu0 %v1583
        %1788 = vmatpush1.bf16.msra.mxu0 %v1582
        %1789 = vmatprep.subr.bf16.mxu0 %v1587
        %1790 = vmatpush1.bf16.msra.mxu0 %v1586
        %1791 = vmatprep.mubr.bf16.mxu0 %v927
        %1792 = vmatmul.mubr.bf16.gmra.mrb[0].mxu0 %v926
        %v1793 = vpop.f32.mrb[0].mxu0
        %v1794 = vadd.f32 %v1753, %v1793
        %v1795 = vpop.f32.mrb[0].mxu0
        %v1796 = vadd.f32 %v1755, %v1795
        %v1797 = vpop.f32.mrb[0].mxu0
        %v1798 = vpop.f32.mrb[0].mxu0
        %1799 = vdwg.mxu0
        %1800 = vmatprep.subr.bf16.mxu0 %v1465
        %1801 = vmatpush1.bf16.msra.mxu0 %v1464
        %1802 = vmatprep.subr.bf16.mxu0 %v1469
        %1803 = vmatpush1.bf16.msra.mxu0 %v1468
        %1804 = vmatprep.subr.bf16.mxu0 %v1473
        %1805 = vmatpush1.bf16.msra.mxu0 %v1472
        %1806 = vmatprep.subr.bf16.mxu0 %v1477
        %1807 = vmatpush1.bf16.msra.mxu0 %v1476
        %1808 = vmatprep.subr.bf16.mxu0 %v1481
        %1809 = vmatpush1.bf16.msra.mxu0 %v1480
        %1810 = vmatprep.subr.bf16.mxu0 %v1485
        %1811 = vmatpush1.bf16.msra.mxu0 %v1484
        %1812 = vmatprep.subr.bf16.mxu0 %v1489
        %1813 = vmatpush1.bf16.msra.mxu0 %v1488
        %1814 = vmatprep.subr.bf16.mxu0 %v1493
        %1815 = vmatpush1.bf16.msra.mxu0 %v1492
        %1816 = vmatprep.subr.bf16.mxu0 %v1497
        %1817 = vmatpush1.bf16.msra.mxu0 %v1496
        %1818 = vmatprep.subr.bf16.mxu0 %v1501
        %1819 = vmatpush1.bf16.msra.mxu0 %v1500
        %1820 = vmatprep.subr.bf16.mxu0 %v1505
        %1821 = vmatpush1.bf16.msra.mxu0 %v1504
        %1822 = vmatprep.subr.bf16.mxu0 %v1509
        %1823 = vmatpush1.bf16.msra.mxu0 %v1508
        %1824 = vmatprep.subr.bf16.mxu0 %v1513
        %1825 = vmatpush1.bf16.msra.mxu0 %v1512
        %1826 = vmatprep.subr.bf16.mxu0 %v1517
        %1827 = vmatpush1.bf16.msra.mxu0 %v1516
        %1828 = vmatprep.subr.bf16.mxu0 %v1521
        %1829 = vmatpush1.bf16.msra.mxu0 %v1520
        %1830 = vmatprep.subr.bf16.mxu0 %v1525
        %1831 = vmatpush1.bf16.msra.mxu0 %v1524
        %1832 = vmatprep.mubr.bf16.mxu0 %v925
        %1833 = vmatmul.mubr.bf16.gmra.mrb[0].mxu0 %v924
        %v1834 = vpop.f32.mrb[0].mxu0
        %v1835 = vadd.f32 %v1069, %v1834
        %v1836 = vpop.f32.mrb[0].mxu0
        %v1837 = vadd.f32 %v1073, %v1836
        %v1838 = vpop.f32.mrb[0].mxu0
        %v1839 = vpop.f32.mrb[0].mxu0
        %1840 = vdwg.mxu0
        %1841 = vmatprep.subr.bf16.mxu0 %v1529
        %1842 = vmatpush1.bf16.msra.mxu0 %v1528
        %1843 = vmatprep.subr.bf16.mxu0 %v1533
        %1844 = vmatpush1.bf16.msra.mxu0 %v1532
        %1845 = vmatprep.subr.bf16.mxu0 %v1537
        %1846 = vmatpush1.bf16.msra.mxu0 %v1536
        %1847 = vmatprep.subr.bf16.mxu0 %v1541
        %1848 = vmatpush1.bf16.msra.mxu0 %v1540
        %1849 = vmatprep.subr.bf16.mxu0 %v1545
        %1850 = vmatpush1.bf16.msra.mxu0 %v1544
        %1851 = vmatprep.subr.bf16.mxu0 %v1549
        %1852 = vmatpush1.bf16.msra.mxu0 %v1548
        %1853 = vmatprep.subr.bf16.mxu0 %v1553
        %1854 = vmatpush1.bf16.msra.mxu0 %v1552
        %1855 = vmatprep.subr.bf16.mxu0 %v1557
        %1856 = vmatpush1.bf16.msra.mxu0 %v1556
        %1857 = vmatprep.subr.bf16.mxu0 %v1561
        %1858 = vmatpush1.bf16.msra.mxu0 %v1560
        %1859 = vmatprep.subr.bf16.mxu0 %v1565
        %1860 = vmatpush1.bf16.msra.mxu0 %v1564
        %1861 = vmatprep.subr.bf16.mxu0 %v1569
        %1862 = vmatpush1.bf16.msra.mxu0 %v1568
        %1863 = vmatprep.subr.bf16.mxu0 %v1573
        %1864 = vmatpush1.bf16.msra.mxu0 %v1572
        %1865 = vmatprep.subr.bf16.mxu0 %v1577
        %1866 = vmatpush1.bf16.msra.mxu0 %v1576
        %1867 = vmatprep.subr.bf16.mxu0 %v1581
        %1868 = vmatpush1.bf16.msra.mxu0 %v1580
        %1869 = vmatprep.subr.bf16.mxu0 %v1585
        %1870 = vmatpush1.bf16.msra.mxu0 %v1584
        %1871 = vmatprep.subr.bf16.mxu0 %v1589
        %1872 = vmatpush1.bf16.msra.mxu0 %v1588
        %1873 = vmatprep.mubr.bf16.mxu0 %v927
        %1874 = vmatmul.mubr.bf16.gmra.mrb[0].mxu0 %v926
        %v1875 = vpop.f32.mrb[0].mxu0
        %v1876 = vadd.f32 %v1835, %v1875
        %v1877 = vpop.f32.mrb[0].mxu0
        %v1878 = vadd.f32 %v1837, %v1877
        %v1879 = vpop.f32.mrb[0].mxu0
        %v1880 = vpop.f32.mrb[0].mxu0
        %1881 = vdwg.mxu0
        %vm1882 = vcmp.ge.f32.partialorder %v1794, 0.0
        %vm1883 = vcmp.ge.f32.partialorder %v1796, 0.0
        %vm1884 = vcmp.ge.f32.partialorder %v1876, 0.0
        %vm1885 = vcmp.ge.f32.partialorder %v1878, 0.0
        %v1886 = vmul.f32 %v1794, 0.2
        %v1887 = vmul.f32 %v1796, 0.2
        %v1888 = vmul.f32 %v1876, 0.2
        %v1889 = vmul.f32 %v1878, 0.2
        %v1890 = vsel %vm1882, %v1794, %v1886
        %v1891 = vsel %vm1883, %v1796, %v1887
        %v1892 = vsel %vm1884, %v1876, %v1888
        %v1893 = vsel %vm1885, %v1878, %v1889
        %v1898 = vcombine.low %v1890, %v1891
        %v1899 = vcombine.low %v1892, %v1893
        %1902 = vst [vmem:[#allocation2] sm:$0xff] %v1898
        %1903 = vst [vmem:[#allocation2 + $0x8] sm:$0xff] %v1899
        %p1904 = scmp.eq.s32.totalorder %s25, 1
        // Predicated region
        $region77: #{tpu_custom_call.1} parent=51 // pred_check
          %p1905 = pneg %p1904
        $region78: #{tpu_custom_call.1} parent=51 // pred_check_branch
          %1907 = sbr.rel (%p1905) target = $region80
        $region79: #{tpu_custom_call.1} parent=51 // pred_region
          %v1908 = vld [vmem:[#allocation2] sm:$0xff]
          %v1909 = vld [vmem:[#allocation2 + $0x8] sm:$0xff]
          %v1912 = vcombine.high %v1908, %v1908
          %v1913 = vcombine.high %v1909, %v1909
          %v1916 = vpack.c.bf16 %v1908, %v1908
          %v1917 = vpack.c.bf16 %v1912, %v1912
          %v1918 = vpack.c.bf16 %v1909, %v1909
          %v1919 = vpack.c.bf16 %v1913, %v1913
          %v1920 = vld [vmem:[#allocation11] sm:$0xf]
          %v1921 = vld [vmem:[#allocation11 + $0x4] sm:$0xf]
          %v1922 = vld [vmem:[#allocation11 + $0x8] sm:$0xf]
          %v1923 = vld [vmem:[#allocation11 + $0xc] sm:$0xf]
          %v1924 = vld [vmem:[#allocation11 + $0x10] sm:$0xf]
          %v1925 = vld [vmem:[#allocation11 + $0x14] sm:$0xf]
          %v1926 = vld [vmem:[#allocation11 + $0x18] sm:$0xf]
          %v1927 = vld [vmem:[#allocation11 + $0x1c] sm:$0xf]
          %v1928 = vld [vmem:[#allocation11 + $0x20] sm:$0xf]
          %v1929 = vld [vmem:[#allocation11 + $0x24] sm:$0xf]
          %v1930 = vld [vmem:[#allocation11 + $0x28] sm:$0xf]
          %v1931 = vld [vmem:[#allocation11 + $0x2c] sm:$0xf]
          %v1932 = vld [vmem:[#allocation11 + $0x30] sm:$0xf]
          %v1933 = vld [vmem:[#allocation11 + $0x34] sm:$0xf]
          %v1934 = vld [vmem:[#allocation11 + $0x38] sm:$0xf]
          %v1935 = vld [vmem:[#allocation11 + $0x3c] sm:$0xf]
          %v1936 = vld [vmem:[#allocation11 + $0x40] sm:$0xf]
          %v1937 = vld [vmem:[#allocation11 + $0x44] sm:$0xf]
          %v1938 = vld [vmem:[#allocation11 + $0x48] sm:$0xf]
          %v1939 = vld [vmem:[#allocation11 + $0x4c] sm:$0xf]
          %v1940 = vld [vmem:[#allocation11 + $0x50] sm:$0xf]
          %v1941 = vld [vmem:[#allocation11 + $0x54] sm:$0xf]
          %v1942 = vld [vmem:[#allocation11 + $0x58] sm:$0xf]
          %v1943 = vld [vmem:[#allocation11 + $0x5c] sm:$0xf]
          %v1944 = vld [vmem:[#allocation11 + $0x60] sm:$0xf]
          %v1945 = vld [vmem:[#allocation11 + $0x64] sm:$0xf]
          %v1946 = vld [vmem:[#allocation11 + $0x68] sm:$0xf]
          %v1947 = vld [vmem:[#allocation11 + $0x6c] sm:$0xf]
          %v1948 = vld [vmem:[#allocation11 + $0x70] sm:$0xf]
          %v1949 = vld [vmem:[#allocation11 + $0x74] sm:$0xf]
          %v1950 = vld [vmem:[#allocation11 + $0x78] sm:$0xf]
          %v1951 = vld [vmem:[#allocation11 + $0x7c] sm:$0xf]
          %v1952 = vld [vmem:[#allocation11 + $0x80] sm:$0xf]
          %v1953 = vld [vmem:[#allocation11 + $0x84] sm:$0xf]
          %v1954 = vld [vmem:[#allocation11 + $0x88] sm:$0xf]
          %v1955 = vld [vmem:[#allocation11 + $0x8c] sm:$0xf]
          %v1956 = vld [vmem:[#allocation11 + $0x90] sm:$0xf]
          %v1957 = vld [vmem:[#allocation11 + $0x94] sm:$0xf]
          %v1958 = vld [vmem:[#allocation11 + $0x98] sm:$0xf]
          %v1959 = vld [vmem:[#allocation11 + $0x9c] sm:$0xf]
          %v1960 = vld [vmem:[#allocation11 + $0xa0] sm:$0xf]
          %v1961 = vld [vmem:[#allocation11 + $0xa4] sm:$0xf]
          %v1962 = vld [vmem:[#allocation11 + $0xa8] sm:$0xf]
          %v1963 = vld [vmem:[#allocation11 + $0xac] sm:$0xf]
          %v1964 = vld [vmem:[#allocation11 + $0xb0] sm:$0xf]
          %v1965 = vld [vmem:[#allocation11 + $0xb4] sm:$0xf]
          %v1966 = vld [vmem:[#allocation11 + $0xb8] sm:$0xf]
          %v1967 = vld [vmem:[#allocation11 + $0xbc] sm:$0xf]
          %v1968 = vld [vmem:[#allocation11 + $0xc0] sm:$0xf]
          %v1969 = vld [vmem:[#allocation11 + $0xc4] sm:$0xf]
          %v1970 = vld [vmem:[#allocation11 + $0xc8] sm:$0xf]
          %v1971 = vld [vmem:[#allocation11 + $0xcc] sm:$0xf]
          %v1972 = vld [vmem:[#allocation11 + $0xd0] sm:$0xf]
          %v1973 = vld [vmem:[#allocation11 + $0xd4] sm:$0xf]
          %v1974 = vld [vmem:[#allocation11 + $0xd8] sm:$0xf]
          %v1975 = vld [vmem:[#allocation11 + $0xdc] sm:$0xf]
          %v1976 = vld [vmem:[#allocation11 + $0xe0] sm:$0xf]
          %v1977 = vld [vmem:[#allocation11 + $0xe4] sm:$0xf]
          %v1978 = vld [vmem:[#allocation11 + $0xe8] sm:$0xf]
          %v1979 = vld [vmem:[#allocation11 + $0xec] sm:$0xf]
          %v1980 = vld [vmem:[#allocation11 + $0xf0] sm:$0xf]
          %v1981 = vld [vmem:[#allocation11 + $0xf4] sm:$0xf]
          %v1982 = vld [vmem:[#allocation11 + $0xf8] sm:$0xf]
          %v1983 = vld [vmem:[#allocation11 + $0xfc] sm:$0xf]
          %v1984 = vld [vmem:[%s7] sm:$0x1]
          %v1986 = vlaneseq
          %v1987 = vshrl.u32 %v1986, 7
          %v1988 = vsub.s32 0, %v1987
          %v1989 = vrot.slane %v1984, %v1988
          %v2055 = vunpack.c.l.b16 %v1920
          %v2056 = vunpack.c.l.b16 %v1921
          %v2057 = vunpack.c.l.b16 %v1922
          %v2058 = vunpack.c.l.b16 %v1923
          %v2059 = vunpack.c.l.b16 %v1924
          %v2060 = vunpack.c.l.b16 %v1925
          %v2061 = vunpack.c.l.b16 %v1926
          %v2062 = vunpack.c.l.b16 %v1927
          %v2063 = vunpack.c.l.b16 %v1928
          %v2064 = vunpack.c.l.b16 %v1929
          %v2065 = vunpack.c.l.b16 %v1930
          %v2066 = vunpack.c.l.b16 %v1931
          %v2067 = vunpack.c.l.b16 %v1932
          %v2068 = vunpack.c.l.b16 %v1933
          %v2069 = vunpack.c.l.b16 %v1934
          %v2070 = vunpack.c.l.b16 %v1935
          %v2071 = vunpack.c.l.b16 %v1936
          %v2072 = vunpack.c.l.b16 %v1937
          %v2073 = vunpack.c.l.b16 %v1938
          %v2074 = vunpack.c.l.b16 %v1939
          %v2075 = vunpack.c.l.b16 %v1940
          %v2076 = vunpack.c.l.b16 %v1941
          %v2077 = vunpack.c.l.b16 %v1942
          %v2078 = vunpack.c.l.b16 %v1943
          %v2079 = vunpack.c.l.b16 %v1944
          %v2080 = vunpack.c.l.b16 %v1945
          %v2081 = vunpack.c.l.b16 %v1946
          %v2082 = vunpack.c.l.b16 %v1947
          %v2083 = vunpack.c.l.b16 %v1948
          %v2084 = vunpack.c.l.b16 %v1949
          %v2085 = vunpack.c.l.b16 %v1950
          %v2086 = vunpack.c.l.b16 %v1951
          %v2087 = vunpack.c.l.b16 %v1952
          %v2088 = vunpack.c.l.b16 %v1953
          %v2089 = vunpack.c.l.b16 %v1954
          %v2090 = vunpack.c.l.b16 %v1955
          %v2091 = vunpack.c.l.b16 %v1956
          %v2092 = vunpack.c.l.b16 %v1957
          %v2093 = vunpack.c.l.b16 %v1958
          %v2094 = vunpack.c.l.b16 %v1959
          %v2095 = vunpack.c.l.b16 %v1960
          %v2096 = vunpack.c.l.b16 %v1961
          %v2097 = vunpack.c.l.b16 %v1962
          %v2098 = vunpack.c.l.b16 %v1963
          %v2099 = vunpack.c.l.b16 %v1964
          %v2100 = vunpack.c.l.b16 %v1965
          %v2101 = vunpack.c.l.b16 %v1966
          %v2102 = vunpack.c.l.b16 %v1967
          %v2103 = vunpack.c.l.b16 %v1968
          %v2104 = vunpack.c.l.b16 %v1969
          %v2105 = vunpack.c.l.b16 %v1970
          %v2106 = vunpack.c.l.b16 %v1971
          %v2107 = vunpack.c.l.b16 %v1972
          %v2108 = vunpack.c.l.b16 %v1973
          %v2109 = vunpack.c.l.b16 %v1974
          %v2110 = vunpack.c.l.b16 %v1975
          %v2111 = vunpack.c.l.b16 %v1976
          %v2112 = vunpack.c.l.b16 %v1977
          %v2113 = vunpack.c.l.b16 %v1978
          %v2114 = vunpack.c.l.b16 %v1979
          %v2115 = vunpack.c.l.b16 %v1980
          %v2116 = vunpack.c.l.b16 %v1981
          %v2117 = vunpack.c.l.b16 %v1982
          %v2118 = vunpack.c.l.b16 %v1983
          %v2119 = vpack.c.b16 %v2056, %v2055
          %v2120 = vpack.c.b16 %v2058, %v2057
          %v2121 = vpack.c.b16 %v2060, %v2059
          %v2122 = vpack.c.b16 %v2062, %v2061
          %v2123 = vpack.c.b16 %v2064, %v2063
          %v2124 = vpack.c.b16 %v2066, %v2065
          %v2125 = vpack.c.b16 %v2068, %v2067
          %v2126 = vpack.c.b16 %v2070, %v2069
          %v2127 = vpack.c.b16 %v2072, %v2071
          %v2128 = vpack.c.b16 %v2074, %v2073
          %v2129 = vpack.c.b16 %v2076, %v2075
          %v2130 = vpack.c.b16 %v2078, %v2077
          %v2131 = vpack.c.b16 %v2080, %v2079
          %v2132 = vpack.c.b16 %v2082, %v2081
          %v2133 = vpack.c.b16 %v2084, %v2083
          %v2134 = vpack.c.b16 %v2086, %v2085
          %v2135 = vpack.c.b16 %v2088, %v2087
          %v2136 = vpack.c.b16 %v2090, %v2089
          %v2137 = vpack.c.b16 %v2092, %v2091
          %v2138 = vpack.c.b16 %v2094, %v2093
          %v2139 = vpack.c.b16 %v2096, %v2095
          %v2140 = vpack.c.b16 %v2098, %v2097
          %v2141 = vpack.c.b16 %v2100, %v2099
          %v2142 = vpack.c.b16 %v2102, %v2101
          %v2143 = vpack.c.b16 %v2104, %v2103
          %v2144 = vpack.c.b16 %v2106, %v2105
          %v2145 = vpack.c.b16 %v2108, %v2107
          %v2146 = vpack.c.b16 %v2110, %v2109
          %v2147 = vpack.c.b16 %v2112, %v2111
          %v2148 = vpack.c.b16 %v2114, %v2113
          %v2149 = vpack.c.b16 %v2116, %v2115
          %v2150 = vpack.c.b16 %v2118, %v2117
          %2183 = vmatprep.subr.bf16.mxu0 0
          %2184 = vmatpush1.bf16.msra.mxu0 %v2119
          %2185 = vmatprep.subr.bf16.mxu0 0
          %2186 = vmatpush1.bf16.msra.mxu0 %v2120
          %2187 = vmatprep.subr.bf16.mxu0 0
          %2188 = vmatpush1.bf16.msra.mxu0 %v2121
          %2189 = vmatprep.subr.bf16.mxu0 0
          %2190 = vmatpush1.bf16.msra.mxu0 %v2122
          %2191 = vmatprep.subr.bf16.mxu0 0
          %2192 = vmatpush1.bf16.msra.mxu0 %v2123
          %2193 = vmatprep.subr.bf16.mxu0 0
          %2194 = vmatpush1.bf16.msra.mxu0 %v2124
          %2195 = vmatprep.subr.bf16.mxu0 0
          %2196 = vmatpush1.bf16.msra.mxu0 %v2125
          %2197 = vmatprep.subr.bf16.mxu0 0
          %2198 = vmatpush1.bf16.msra.mxu0 %v2126
          %2199 = vmatprep.subr.bf16.mxu0 0
          %2200 = vmatpush1.bf16.msra.mxu0 %v2127
          %2201 = vmatprep.subr.bf16.mxu0 0
          %2202 = vmatpush1.bf16.msra.mxu0 %v2128
          %2203 = vmatprep.subr.bf16.mxu0 0
          %2204 = vmatpush1.bf16.msra.mxu0 %v2129
          %2205 = vmatprep.subr.bf16.mxu0 0
          %2206 = vmatpush1.bf16.msra.mxu0 %v2130
          %2207 = vmatprep.subr.bf16.mxu0 0
          %2208 = vmatpush1.bf16.msra.mxu0 %v2131
          %2209 = vmatprep.subr.bf16.mxu0 0
          %2210 = vmatpush1.bf16.msra.mxu0 %v2132
          %2211 = vmatprep.subr.bf16.mxu0 0
          %2212 = vmatpush1.bf16.msra.mxu0 %v2133
          %2213 = vmatprep.subr.bf16.mxu0 0
          %2214 = vmatpush1.bf16.msra.mxu0 %v2134
          %2215 = vmatprep.mubr.bf16.mxu0 %v1917
          %2216 = vmatmul.mubr.bf16.gmra.mrb[0].mxu0 %v1916
          %v2217 = vpop.f32.mrb[0].mxu0
          %v2218 = vadd.f32 %v1989, %v2217
          %v2219 = vpop.f32.mrb[0].mxu0
          %v2220 = vpop.f32.mrb[0].mxu0
          %v2221 = vpop.f32.mrb[0].mxu0
          %2222 = vdwg.mxu0
          %2223 = vmatprep.subr.bf16.mxu0 0
          %2224 = vmatpush1.bf16.msra.mxu0 %v2135
          %2225 = vmatprep.subr.bf16.mxu0 0
          %2226 = vmatpush1.bf16.msra.mxu0 %v2136
          %2227 = vmatprep.subr.bf16.mxu0 0
          %2228 = vmatpush1.bf16.msra.mxu0 %v2137
          %2229 = vmatprep.subr.bf16.mxu0 0
          %2230 = vmatpush1.bf16.msra.mxu0 %v2138
          %2231 = vmatprep.subr.bf16.mxu0 0
          %2232 = vmatpush1.bf16.msra.mxu0 %v2139
          %2233 = vmatprep.subr.bf16.mxu0 0
          %2234 = vmatpush1.bf16.msra.mxu0 %v2140
          %2235 = vmatprep.subr.bf16.mxu0 0
          %2236 = vmatpush1.bf16.msra.mxu0 %v2141
          %2237 = vmatprep.subr.bf16.mxu0 0
          %2238 = vmatpush1.bf16.msra.mxu0 %v2142
          %2239 = vmatprep.subr.bf16.mxu0 0
          %2240 = vmatpush1.bf16.msra.mxu0 %v2143
          %2241 = vmatprep.subr.bf16.mxu0 0
          %2242 = vmatpush1.bf16.msra.mxu0 %v2144
          %2243 = vmatprep.subr.bf16.mxu0 0
          %2244 = vmatpush1.bf16.msra.mxu0 %v2145
          %2245 = vmatprep.subr.bf16.mxu0 0
          %2246 = vmatpush1.bf16.msra.mxu0 %v2146
          %2247 = vmatprep.subr.bf16.mxu0 0
          %2248 = vmatpush1.bf16.msra.mxu0 %v2147
          %2249 = vmatprep.subr.bf16.mxu0 0
          %2250 = vmatpush1.bf16.msra.mxu0 %v2148
          %2251 = vmatprep.subr.bf16.mxu0 0
          %2252 = vmatpush1.bf16.msra.mxu0 %v2149
          %2253 = vmatprep.subr.bf16.mxu0 0
          %2254 = vmatpush1.bf16.msra.mxu0 %v2150
          %2255 = vmatprep.mubr.bf16.mxu0 %v1919
          %2256 = vmatmul.mubr.bf16.gmra.mrb[0].mxu0 %v1918
          %v2257 = vpop.f32.mrb[0].mxu0
          %v2258 = vadd.f32 %v2218, %v2257
          %v2259 = vpop.f32.mrb[0].mxu0
          %v2260 = vpop.f32.mrb[0].mxu0
          %v2261 = vpop.f32.mrb[0].mxu0
          %2262 = vdwg.mxu0
          %v2263 = vsub.f32 0.0, %v2258
          %v2264 = vmul.f32 %v2263, 1.442695
          %v2265 = vpow.pop %v2264
          %v2266 = vadd.f32 %v2265, 1.0
          %v2267 = vrcp.pop %v2266
          %2268 = vst [vmem:[#allocation12] sm:$0xf] %v2267
        $region80: #{tpu_custom_call.1} parent=51 // pred_fallthru
          _
        // Predicated region
        $region81: #{tpu_custom_call.1} parent=51 // pred_check
          %p2269 = pneg %p216
        $region82: #{tpu_custom_call.1} parent=51 // pred_check_branch
          %2271 = sbr.rel (%p2269) target = $region84
        $region83: #{tpu_custom_call.1} parent=51 // pred_region
          %s2273 = ssub.s32 64, 64
          %2274 = vsyncadd [#allocation5], %s2273
          %s2276 = sshll.u32 [#allocation12], 4
          %s2277 = int_to_ptr.vmem [resolvable:$true] %s2276
          %2279 = dma.vmem_to_hbm [thread:$0]  %s2277, 64, %s8, [#allocation5]
        $region84: #{tpu_custom_call.1} parent=51 // pred_fallthru
          _
        // Predicated region
        $region85: #{tpu_custom_call.1} parent=51 // pred_check
          %p2280 = pneg %p216
        $region86: #{tpu_custom_call.1} parent=51 // pred_check_branch
          %2282 = sbr.rel (%p2280) target = $region88
        $region87: #{tpu_custom_call.1} parent=51 // pred_region
          %2283 = dma.done [#allocation5], 64
        $region88: #{tpu_custom_call.1} parent=51 // pred_fallthru
          _
      $region52: #{tpu_custom_call.1} parent=5 // pred_fallthru
        _
      %p2284 = scmp.le.s32.totalorder 2, %s20
      // Predicated region
      $region89: #{tpu_custom_call.1} parent=5 // pred_check
        %p2285 = pneg %p2284
      $region90: #{tpu_custom_call.1} parent=5 // pred_check_branch
        %2287 = sbr.rel (%p2285) target = $region92
      $region91: #{tpu_custom_call.1} parent=5 // pred_region
        %s2288 = ssub.s32 %s20, 2
      $region92: #{tpu_custom_call.1} parent=5 // pred_fallthru
        _
    $region6: #{tpu_custom_call.1} parent=1 // loop_footer
      %s24 = sadd.s32 1, %s20
    $region7: #{tpu_custom_call.1} parent=1 // loop_footer_branch
      %19 = sbr.rel target = $region3
    $region8: #{tpu_custom_call.1} parent=1 // loop_exit
      _
    %2289 = vsyncpa [#allocation4], 1
    %s2290 = scalar_lea.sflag [#allocation4], 1
    %2291 = vsyncpa %s2290, 1
    %2292 = vsyncpa [#allocation7], 1
    %2293 = vsyncpa [#allocation10], 1
    %s2294 = scalar_lea.sflag [#allocation10], 1
    %2295 = vsyncpa %s2294, 1
    %2296 = vsyncpa [#allocation5], 1
    %s2297 = scalar_lea.sflag [#allocation5], 1
    %2298 = vsyncpa %s2297, 1

</llo_original>
